<compile_context>
chip_gen: v7x
topology: tpu7x:2x2x1
jax: 0.10.0
libtpu: 0.0.40
codegen_flags: <defaults>
</compile_context>

<pallas_src>
import jax
import jax.numpy as jnp
from jax.experimental import pallas as pl
from jax.experimental.pallas import tpu as pltpu

HIDDEN1 = 1024
HIDDEN2 = 128
HEAD_DIM = 64


def net_kernel(a_ref,                       # (1,1) PReLU slope, SMEM
               x_ref,                       # (TB, D_in)           f32
               w_in_ref, b_in_ref,          # (D_in, 1024) bf16, (1, 1024) f32
               w1_ref, b1_ref,              # (1024, 128) bf16, (1, 128) f32
               wh_ref, bh_ref,              # (128, O*64) bf16, (1, O*64) f32
               wng_ref, bg_ref,             # (O*64, O*64) bf16 = kron(Wn^T, Wg), (1, O*64) f32
               wout_ref, bout_ref,          # (O*64, OUT_PAD) bf16, (1, OUT_PAD) f32
               out_ref):                    # (TB, OUT_PAD)        f32
    f32 = jnp.float32
    cdt = w_in_ref.dtype                    # matmul compute dtype (bf16)

    x = x_ref[...].astype(cdt)

    # fc_input + ReLU
    h = jnp.dot(x, w_in_ref[...], preferred_element_type=f32) + b_in_ref[...]
    h = jnp.maximum(h, 0.0).astype(cdt)                            # (TB, 1024)

    # fc1 + ReLU
    h = jnp.dot(h, w1_ref[...], preferred_element_type=f32) + b1_ref[...]
    h = jnp.maximum(h, 0.0).astype(cdt)                            # (TB, 128)

    # all per-head Linear(128->64) fused into one lane-dense matmul + ReLU
    hid = jnp.dot(h, wh_ref[...], preferred_element_type=f32) + bh_ref[...]
    hid = jnp.maximum(hid, 0.0).astype(cdt)                        # (TB, O*64)

    # fused head-mixing + trans_gcn: kron(Wn^T, I64) @ kron(I_O, Wg) = kron(Wn^T, Wg)
    t = jnp.dot(hid, wng_ref[...], preferred_element_type=f32) + bg_ref[...]
    trans = jax.nn.sigmoid(t).astype(cdt)                          # (TB, O*64)

    # output_mapping (64->1 per head) folded into one (O*64, OUT_PAD) matmul;
    # columns >= O are zero-padded so the store is lane-dense (128 wide).
    z = jnp.dot(trans, wout_ref[...], preferred_element_type=f32) + bout_ref[...]

    # PReLU with scalar slope from SMEM
    a = a_ref[0, 0]
    out_ref[...] = jnp.where(z >= 0.0, z, a * z)                   # (TB, OUT_PAD)


def pack_params(p, compute_dtype=jnp.bfloat16):
    """Flatten / kron-expand raw parameters into the kernel's 2-D layout.

    Call this ONCE (weights are static at inference) and reuse the result.
    Weight matrices are cast to `compute_dtype` for the MXU; biases stay f32.
    """
    O = p['w_nodes'].shape[0]
    out_pad = pl.cdiv(O, 128) * 128
    cd = compute_dtype

    wh_flat = jnp.transpose(p['w_heads'], (1, 0, 2)).reshape(HIDDEN2, O * HEAD_DIM)
    bh_flat = p['b_heads'].reshape(1, O * HEAD_DIM)

    # Kronecker mixed-product fusion of nodes_trans_nn and trans_gcn.
    wng = jnp.kron(p['w_nodes'].T.astype(jnp.float32), p['w_gcn'])   # (O*64, O*64)
    bg_flat = jnp.tile(p['b_gcn'], (1, O))                           # (1, O*64)

    w_out = jnp.kron(jnp.eye(O, out_pad, dtype=jnp.float32), p['w_map'])  # (O*64, OUT_PAD)
    b_out = jnp.zeros((1, out_pad), jnp.float32).at[0, :O].set(p['b_map'][0, 0])

    return dict(w_in=p['w_in'].astype(cd), b_in=p['b_in'],
                w1=p['w1'].astype(cd), b1=p['b1'],
                wh=wh_flat.astype(cd), bh=bh_flat,
                wng=wng.astype(cd), bg=bg_flat,
                w_out=w_out.astype(cd), b_out=b_out)


def net_forward(x, prelu_a, packed, output_dim):
    B, d_in = x.shape
    out_pad = packed['b_out'].shape[1]

    # Batch tiling: TB rows per grid step; 256 fills the v6e/v7x 256x256 MXU
    # and amortizes per-step overhead; weights stay VMEM-resident
    # (constant index maps) across steps.
    TB = B if B <= 128 else 256
    Bp = pl.cdiv(B, TB) * TB
    if Bp != B:
        x = jnp.pad(x, ((0, Bp - B), (0, 0)))
    grid = (Bp // TB,)

    weights = (packed['w_in'], packed['b_in'], packed['w1'], packed['b1'],
               packed['wh'], packed['bh'], packed['wng'], packed['bg'],
               packed['w_out'], packed['b_out'])

    def const_spec(a):
        nd = a.ndim
        return pl.BlockSpec(a.shape, lambda i, nd=nd: (0,) * nd)

    in_specs = ([pl.BlockSpec(memory_space=pltpu.MemorySpace.SMEM),   # prelu_a
                 pl.BlockSpec((TB, d_in), lambda i: (i, 0))]          # x tile
                + [const_spec(w) for w in weights])

    out = pl.pallas_call(
        net_kernel,
        grid=grid,
        in_specs=in_specs,
        out_specs=pl.BlockSpec((TB, out_pad), lambda i: (i, 0)),
        out_shape=jax.ShapeDtypeStruct((Bp, out_pad), jnp.float32),
        compiler_params=pltpu.CompilerParams(
            dimension_semantics=("parallel",),
            vmem_limit_bytes=32 * 1024 * 1024),
    )(prelu_a, x, *weights)

    return out[:B, :output_dim]


def init_params(key, input_dim, output_dim):
    """Deterministic parameter init (PyTorch-Linear-style uniform bounds)."""
    ks = jax.random.split(key, 8)

    def lin(k, fan_in, fan_out):
        kw, kb = jax.random.split(k)
        bound = 1.0 / jnp.sqrt(jnp.float32(fan_in))
        w = jax.random.uniform(kw, (fan_in, fan_out), jnp.float32, -bound, bound)
        b = jax.random.uniform(kb, (1, fan_out), jnp.float32, -bound, bound)
        return w, b

    w_in, b_in = lin(ks[0], input_dim, HIDDEN1)
    w1, b1 = lin(ks[1], HIDDEN1, HIDDEN2)

    head_keys = jax.random.split(ks[2], output_dim)
    heads = [lin(hk, HIDDEN2, HEAD_DIM) for hk in head_keys]
    w_heads = jnp.stack([w for w, _ in heads])          # (O, 128, 64)
    b_heads = jnp.stack([b[0] for _, b in heads])       # (O, 64)

    # coef_m is a required constructor arg in the reference; synthesize it
    # deterministically. nodes_trans_nn.weight = coef_m * 0.25.
    coef_m = jax.random.uniform(ks[3], (output_dim, output_dim), jnp.float32,
                                0.0, 1.0)
    w_nodes = coef_m * 0.25                              # (O, O)

    w_gcn, b_gcn = lin(ks[4], HEAD_DIM, HEAD_DIM)
    w_map, b_map = lin(ks[5], HEAD_DIM, 1)
    prelu_a = jnp.full((1, 1), 0.25, jnp.float32)        # nn.PReLU() default

    return dict(w_in=w_in, b_in=b_in, w1=w1, b1=b1,
                w_heads=w_heads, b_heads=b_heads, w_nodes=w_nodes,
                w_gcn=w_gcn, b_gcn=b_gcn, w_map=w_map, b_map=b_map,
                prelu_a=prelu_a)


def net_ref(x, p):
    """Pure-JAX f32 reference (natural per-head form) for correctness check."""
    h = jax.nn.relu(x @ p['w_in'] + p['b_in'])
    h = jax.nn.relu(h @ p['w1'] + p['b1'])
    hid = jax.nn.relu(jnp.einsum('bk,okd->bod', h, p['w_heads'])
                      + p['b_heads'][None])
    nodes = jnp.einsum('ik,bkd->bid', p['w_nodes'], hid)
    trans = jax.nn.sigmoid(jnp.einsum('bid,de->bie', nodes, p['w_gcn'])
                           + p['b_gcn'][None])
    z = (jnp.einsum('bid,de->bie', trans, p['w_map']) + p['b_map'][None])[..., 0]
    a = p['prelu_a'][0, 0]
    return jnp.where(z >= 0.0, z, a * z)


if __name__ == "__main__":
    B, INPUT_DIM, OUTPUT_DIM = 2, 32, 8

    key = jax.random.PRNGKey(0)
    kx, kp = jax.random.split(key)
    x = jax.random.normal(kx, (B, INPUT_DIM), jnp.float32)
    params = init_params(kp, INPUT_DIM, OUTPUT_DIM)

    # Pack (kron-fuse, flatten, cast to bf16) ONCE outside the forward path.
    packed = pack_params(params)

    out = net_forward(x, params['prelu_a'], packed, OUTPUT_DIM)
    out = jax.block_until_ready(out)

    ref = net_ref(x, params)
    assert out.shape == (B, OUTPUT_DIM)
    # bf16 matmul inputs (f32 accumulation) -> loosened tolerance vs pure f32.
    assert jnp.allclose(out, ref, atol=2e-2, rtol=2e-2), (out, ref)

    print("KERNEL_OK")
</pallas_src>

<mosaic_0001>
module attributes {stable_mosaic.version = 11 : i64} {
  func.func @net_kernel(%arg0: i32, %arg1: memref<1x1xf32, #tpu.memory_space<smem>>, %arg2: memref<2x32xf32, #tpu.memory_space<vmem>>, %arg3: memref<32x1024xbf16, #tpu.memory_space<vmem>>, %arg4: memref<1x1024xf32, #tpu.memory_space<vmem>>, %arg5: memref<1024x128xbf16, #tpu.memory_space<vmem>>, %arg6: memref<1x128xf32, #tpu.memory_space<vmem>>, %arg7: memref<128x512xbf16, #tpu.memory_space<vmem>>, %arg8: memref<1x512xf32, #tpu.memory_space<vmem>>, %arg9: memref<512x512xbf16, #tpu.memory_space<vmem>>, %arg10: memref<1x512xf32, #tpu.memory_space<vmem>>, %arg11: memref<512x128xbf16, #tpu.memory_space<vmem>>, %arg12: memref<1x128xf32, #tpu.memory_space<vmem>>, %arg13: memref<2x128xf32, #tpu.memory_space<vmem>>) attributes {dimension_semantics = [#tpu.dimension_semantics<parallel>], iteration_bounds = array<i64: 1>, scalar_prefetch = 0 : i64, scratch_operands = 0 : i64, tpu.core_type = #tpu.core_type<tc>, window_params = [{transform_indices = @transform_0, window_bounds = array<i64: 1, 1>}, {transform_indices = @transform_1, window_bounds = array<i64: 2, 32>}, {pipeline_mode = #tpu.pipeline_mode<synchronous>, transform_indices = @transform_2, window_bounds = array<i64: 32, 1024>}, {pipeline_mode = #tpu.pipeline_mode<synchronous>, transform_indices = @transform_3, window_bounds = array<i64: 1, 1024>}, {pipeline_mode = #tpu.pipeline_mode<synchronous>, transform_indices = @transform_4, window_bounds = array<i64: 1024, 128>}, {pipeline_mode = #tpu.pipeline_mode<synchronous>, transform_indices = @transform_5, window_bounds = array<i64: 1, 128>}, {pipeline_mode = #tpu.pipeline_mode<synchronous>, transform_indices = @transform_6, window_bounds = array<i64: 128, 512>}, {pipeline_mode = #tpu.pipeline_mode<synchronous>, transform_indices = @transform_7, window_bounds = array<i64: 1, 512>}, {pipeline_mode = #tpu.pipeline_mode<synchronous>, transform_indices = @transform_8, window_bounds = array<i64: 512, 512>}, {pipeline_mode = #tpu.pipeline_mode<synchronous>, transform_indices = @transform_9, window_bounds = array<i64: 1, 512>}, {pipeline_mode = #tpu.pipeline_mode<synchronous>, transform_indices = @transform_10, window_bounds = array<i64: 512, 128>}, {pipeline_mode = #tpu.pipeline_mode<synchronous>, transform_indices = @transform_11, window_bounds = array<i64: 1, 128>}, {transform_indices = @transform_12, window_bounds = array<i64: 2, 128>}]} {
    %c0 = arith.constant 0 : index
    %c0_0 = arith.constant 0 : index
    %0 = vector.load %arg2[%c0, %c0_0] : memref<2x32xf32, #tpu.memory_space<vmem>>, vector<2x32xf32>
    %1 = arith.truncf %0 : vector<2x32xf32> to vector<2x32xbf16>
    %c0_1 = arith.constant 0 : index
    %c0_2 = arith.constant 0 : index
    %2 = vector.load %arg3[%c0_1, %c0_2] : memref<32x1024xbf16, #tpu.memory_space<vmem>>, vector<32x1024xbf16>
    %cst = arith.constant dense<0.000000e+00> : vector<2x1024xf32>
    %3 = tpu.matmul %1, %2, %cst {dimension_numbers = #tpu.dot_dimension_numbers<[1], [0], [0], [1], [0, 0, 1, 1], [], []>} : vector<2x32xbf16>, vector<32x1024xbf16>, vector<2x1024xf32> -> vector<2x1024xf32>
    %c0_3 = arith.constant 0 : index
    %c0_4 = arith.constant 0 : index
    %4 = vector.load %arg4[%c0_3, %c0_4] : memref<1x1024xf32, #tpu.memory_space<vmem>>, vector<1x1024xf32>
    %5 = vector.broadcast %4 : vector<1x1024xf32> to vector<2x1024xf32>
    %6 = arith.addf %3, %5 : vector<2x1024xf32>
    %cst_5 = arith.constant 0.000000e+00 : f32
    %7 = vector.broadcast %cst_5 : f32 to vector<2x1024xf32>
    %8 = arith.maximumf %6, %7 : vector<2x1024xf32>
    %9 = arith.truncf %8 : vector<2x1024xf32> to vector<2x1024xbf16>
    %c0_6 = arith.constant 0 : index
    %c0_7 = arith.constant 0 : index
    %10 = vector.load %arg5[%c0_6, %c0_7] : memref<1024x128xbf16, #tpu.memory_space<vmem>>, vector<1024x128xbf16>
    %cst_8 = arith.constant dense<0.000000e+00> : vector<2x128xf32>
    %11 = tpu.matmul %9, %10, %cst_8 {dimension_numbers = #tpu.dot_dimension_numbers<[1], [0], [0], [1], [0, 0, 1, 1], [], []>} : vector<2x1024xbf16>, vector<1024x128xbf16>, vector<2x128xf32> -> vector<2x128xf32>
    %c0_9 = arith.constant 0 : index
    %c0_10 = arith.constant 0 : index
    %12 = vector.load %arg6[%c0_9, %c0_10] : memref<1x128xf32, #tpu.memory_space<vmem>>, vector<1x128xf32>
    %13 = vector.broadcast %12 : vector<1x128xf32> to vector<2x128xf32>
    %14 = arith.addf %11, %13 : vector<2x128xf32>
    %cst_11 = arith.constant 0.000000e+00 : f32
    %15 = vector.broadcast %cst_11 : f32 to vector<2x128xf32>
    %16 = arith.maximumf %14, %15 : vector<2x128xf32>
    %17 = arith.truncf %16 : vector<2x128xf32> to vector<2x128xbf16>
    %c0_12 = arith.constant 0 : index
    %c0_13 = arith.constant 0 : index
    %18 = vector.load %arg7[%c0_12, %c0_13] : memref<128x512xbf16, #tpu.memory_space<vmem>>, vector<128x512xbf16>
    %cst_14 = arith.constant dense<0.000000e+00> : vector<2x512xf32>
    %19 = tpu.matmul %17, %18, %cst_14 {dimension_numbers = #tpu.dot_dimension_numbers<[1], [0], [0], [1], [0, 0, 1, 1], [], []>} : vector<2x128xbf16>, vector<128x512xbf16>, vector<2x512xf32> -> vector<2x512xf32>
    %c0_15 = arith.constant 0 : index
    %c0_16 = arith.constant 0 : index
    %20 = vector.load %arg8[%c0_15, %c0_16] : memref<1x512xf32, #tpu.memory_space<vmem>>, vector<1x512xf32>
    %21 = vector.broadcast %20 : vector<1x512xf32> to vector<2x512xf32>
    %22 = arith.addf %19, %21 : vector<2x512xf32>
    %cst_17 = arith.constant 0.000000e+00 : f32
    %23 = vector.broadcast %cst_17 : f32 to vector<2x512xf32>
    %24 = arith.maximumf %22, %23 : vector<2x512xf32>
    %25 = arith.truncf %24 : vector<2x512xf32> to vector<2x512xbf16>
    %c0_18 = arith.constant 0 : index
    %c0_19 = arith.constant 0 : index
    %26 = vector.load %arg9[%c0_18, %c0_19] : memref<512x512xbf16, #tpu.memory_space<vmem>>, vector<512x512xbf16>
    %cst_20 = arith.constant dense<0.000000e+00> : vector<2x512xf32>
    %27 = tpu.matmul %25, %26, %cst_20 {dimension_numbers = #tpu.dot_dimension_numbers<[1], [0], [0], [1], [0, 0, 1, 1], [], []>} : vector<2x512xbf16>, vector<512x512xbf16>, vector<2x512xf32> -> vector<2x512xf32>
    %c0_21 = arith.constant 0 : index
    %c0_22 = arith.constant 0 : index
    %28 = vector.load %arg10[%c0_21, %c0_22] : memref<1x512xf32, #tpu.memory_space<vmem>>, vector<1x512xf32>
    %29 = vector.broadcast %28 : vector<1x512xf32> to vector<2x512xf32>
    %30 = arith.addf %27, %29 : vector<2x512xf32>
    %31 = arith.negf %30 : vector<2x512xf32>
    %32 = math.exp %31 : vector<2x512xf32>
    %cst_23 = arith.constant 1.000000e+00 : f32
    %33 = vector.broadcast %cst_23 : f32 to vector<2x512xf32>
    %34 = arith.addf %33, %32 : vector<2x512xf32>
    %35 = arith.divf %33, %34 : vector<2x512xf32>
    %36 = arith.truncf %35 : vector<2x512xf32> to vector<2x512xbf16>
    %c0_24 = arith.constant 0 : index
    %c0_25 = arith.constant 0 : index
    %37 = vector.load %arg11[%c0_24, %c0_25] : memref<512x128xbf16, #tpu.memory_space<vmem>>, vector<512x128xbf16>
    %cst_26 = arith.constant dense<0.000000e+00> : vector<2x128xf32>
    %38 = tpu.matmul %36, %37, %cst_26 {dimension_numbers = #tpu.dot_dimension_numbers<[1], [0], [0], [1], [0, 0, 1, 1], [], []>} : vector<2x512xbf16>, vector<512x128xbf16>, vector<2x128xf32> -> vector<2x128xf32>
    %c0_27 = arith.constant 0 : index
    %c0_28 = arith.constant 0 : index
    %39 = vector.load %arg12[%c0_27, %c0_28] : memref<1x128xf32, #tpu.memory_space<vmem>>, vector<1x128xf32>
    %40 = vector.broadcast %39 : vector<1x128xf32> to vector<2x128xf32>
    %41 = arith.addf %38, %40 : vector<2x128xf32>
    %c0_29 = arith.constant 0 : index
    %c0_30 = arith.constant 0 : index
    %42 = memref.load %arg1[%c0_29, %c0_30] : memref<1x1xf32, #tpu.memory_space<smem>>
    %cst_31 = arith.constant 0.000000e+00 : f32
    %43 = vector.broadcast %cst_31 : f32 to vector<2x128xf32>
    %44 = arith.cmpf oge, %41, %43 : vector<2x128xf32>
    %45 = vector.broadcast %42 : f32 to vector<2x128xf32>
    %46 = arith.mulf %45, %41 : vector<2x128xf32>
    %47 = arith.select %44, %41, %46 : vector<2x128xi1>, vector<2x128xf32>
    %c0_32 = arith.constant 0 : index
    %c0_33 = arith.constant 0 : index
    %48 = vector.load %arg13[%c0_32, %c0_33] : memref<2x128xf32, #tpu.memory_space<vmem>>, vector<2x128xf32>
    tpu.vector_store %arg13[%c0_32, %c0_33], %47 {strides = array<i32>} : memref<2x128xf32, #tpu.memory_space<vmem>>, vector<2x128xf32>,
    return
  }
  func.func @transform_0(%arg0: i32) -> (i32, i32) {
    %c0_i32 = arith.constant 0 : i32
    %c0_i32_0 = arith.constant 0 : i32
    %c0_i32_1 = arith.constant 0 : i32
    return %c0_i32, %c0_i32_0 : i32, i32
  }
  func.func @transform_1(%arg0: i32) -> (i32, i32) {
    %c0_i32 = arith.constant 0 : i32
    %c0_i32_0 = arith.constant 0 : i32
    return %arg0, %c0_i32 : i32, i32
  }
  func.func @transform_2(%arg0: i32) -> (i32, i32) {
    %c0_i32 = arith.constant 0 : i32
    %c0_i32_0 = arith.constant 0 : i32
    %c0_i32_1 = arith.constant 0 : i32
    return %c0_i32, %c0_i32_0 : i32, i32
  }
  func.func @transform_3(%arg0: i32) -> (i32, i32) {
    %c0_i32 = arith.constant 0 : i32
    %c0_i32_0 = arith.constant 0 : i32
    %c0_i32_1 = arith.constant 0 : i32
    return %c0_i32, %c0_i32_0 : i32, i32
  }
  func.func @transform_4(%arg0: i32) -> (i32, i32) {
    %c0_i32 = arith.constant 0 : i32
    %c0_i32_0 = arith.constant 0 : i32
    %c0_i32_1 = arith.constant 0 : i32
    return %c0_i32, %c0_i32_0 : i32, i32
  }
  func.func @transform_5(%arg0: i32) -> (i32, i32) {
    %c0_i32 = arith.constant 0 : i32
    %c0_i32_0 = arith.constant 0 : i32
    %c0_i32_1 = arith.constant 0 : i32
    return %c0_i32, %c0_i32_0 : i32, i32
  }
  func.func @transform_6(%arg0: i32) -> (i32, i32) {
    %c0_i32 = arith.constant 0 : i32
    %c0_i32_0 = arith.constant 0 : i32
    %c0_i32_1 = arith.constant 0 : i32
    return %c0_i32, %c0_i32_0 : i32, i32
  }
  func.func @transform_7(%arg0: i32) -> (i32, i32) {
    %c0_i32 = arith.constant 0 : i32
    %c0_i32_0 = arith.constant 0 : i32
    %c0_i32_1 = arith.constant 0 : i32
    return %c0_i32, %c0_i32_0 : i32, i32
  }
  func.func @transform_8(%arg0: i32) -> (i32, i32) {
    %c0_i32 = arith.constant 0 : i32
    %c0_i32_0 = arith.constant 0 : i32
    %c0_i32_1 = arith.constant 0 : i32
    return %c0_i32, %c0_i32_0 : i32, i32
  }
  func.func @transform_9(%arg0: i32) -> (i32, i32) {
    %c0_i32 = arith.constant 0 : i32
    %c0_i32_0 = arith.constant 0 : i32
    %c0_i32_1 = arith.constant 0 : i32
    return %c0_i32, %c0_i32_0 : i32, i32
  }
  func.func @transform_10(%arg0: i32) -> (i32, i32) {
    %c0_i32 = arith.constant 0 : i32
    %c0_i32_0 = arith.constant 0 : i32
    %c0_i32_1 = arith.constant 0 : i32
    return %c0_i32, %c0_i32_0 : i32, i32
  }
  func.func @transform_11(%arg0: i32) -> (i32, i32) {
    %c0_i32 = arith.constant 0 : i32
    %c0_i32_0 = arith.constant 0 : i32
    %c0_i32_1 = arith.constant 0 : i32
    return %c0_i32, %c0_i32_0 : i32, i32
  }
  func.func @transform_12(%arg0: i32) -> (i32, i32) {
    %c0_i32 = arith.constant 0 : i32
    %c0_i32_0 = arith.constant 0 : i32
    return %arg0, %c0_i32 : i32, i32
  }
}

</mosaic_0001>

<llo_original>
// kernel: tpu_custom_call.1
$region0: #{tpu_custom_call.1}
  #allocation0 [shape = 'u32[]', space=smem, size = 0x4, offset = 0x4, fixed_abs, tag = 'smem constant byte address 0x4 - core index']
  #allocation1 [shape = 'u32[144,128]{1,0:T(1,128)}', space=vmem, size = 0x12000, scoped, tag = 'internal scratch']
  #allocation2 [shape = 'f32[1,1]{1,0:T(1,128)S(6)}', space=smem, size = 0x200, scoped, tag = 'scoped memory for tpu_custom_call.1']
  %s0 = inlined_call_operand.<no memory space> [shape: f32[1,1], index: 0, kind: input, shape index: {}]
  %s1 = inlined_call_operand.vmem [shape: f32[2,32], index: 1, kind: input, shape index: {}]
  %s2 = inlined_call_operand.hbm [shape: bf16[32,1024], index: 2, kind: input, shape index: {}]
  %s3 = inlined_call_operand.vmem [shape: f32[1,1024], index: 3, kind: input, shape index: {}]
  %s4 = inlined_call_operand.hbm [shape: bf16[1024,128], index: 4, kind: input, shape index: {}]
  %s5 = inlined_call_operand.hbm [shape: f32[1,128], index: 5, kind: input, shape index: {}]
  %s6 = inlined_call_operand.hbm [shape: bf16[128,512], index: 6, kind: input, shape index: {}]
  %s7 = inlined_call_operand.vmem [shape: f32[1,512], index: 7, kind: input, shape index: {}]
  %s8 = inlined_call_operand.hbm [shape: bf16[512,512], index: 8, kind: input, shape index: {}]
  %s9 = inlined_call_operand.vmem [shape: f32[1,512], index: 9, kind: input, shape index: {}]
  %s10 = inlined_call_operand.hbm [shape: bf16[512,128], index: 10, kind: input, shape index: {}]
  %s11 = inlined_call_operand.vmem [shape: f32[1,128], index: 11, kind: input, shape index: {}]
  %s12 = inlined_call_operand.hbm [shape: f32[2,128], index: 12, kind: output, shape index: {}]
  %s13 = sld [smem:[#allocation0]]
  $region82: #{tpu_custom_call.1} parent=0
    _
  %s15 = ssub.s32 1, %s13
  %s16 = scalar_select 0, %s15, %s13
  %17 = sst [smem:[#allocation2]] %s0
  $region1: #{tpu_custom_call.1} parent=0
    #allocation3 [shape = 'u8[65536]{0}', space=vmem, size = 0x10000, scoped, tag = 'input window, operand 2, single buffered']
    #allocation4 [shape = 's32[1]{0}', space=sflag, size = 0x4, scoped, tag = 'scoped memory for tpu_custom_call.1']
    #allocation5 [shape = 's32[1]{0}', space=sflag, size = 0x4, scoped, tag = 'scoped memory for tpu_custom_call.1']
    #allocation6 [shape = 'u8[262144]{0}', space=vmem, size = 0x40000, scoped, tag = 'input window, operand 4, single buffered']
    #allocation7 [shape = 's32[1]{0}', space=sflag, size = 0x4, scoped, tag = 'scoped memory for tpu_custom_call.1']
    #allocation8 [shape = 'u8[512]{0}', space=vmem, size = 0x400, scoped, tag = 'input window, operand 5, single buffered']
    #allocation9 [shape = 'u8[131072]{0}', space=vmem, size = 0x20000, scoped, tag = 'input window, operand 6, single buffered']
    #allocation10 [shape = 's32[1]{0}', space=sflag, size = 0x4, scoped, tag = 'scoped memory for tpu_custom_call.1']
    #allocation11 [shape = 'u8[524288]{0}', space=vmem, size = 0x80000, scoped, tag = 'input window, operand 8, single buffered']
    #allocation12 [shape = 'u8[131072]{0}', space=vmem, size = 0x20000, scoped, tag = 'input window, operand 10, single buffered']
    #allocation13 [shape = 's32[1]{0}', space=sflag, size = 0x4, scoped, tag = 'scoped memory for tpu_custom_call.1']
    #allocation14 [shape = 'u8[1024]{0}', space=vmem, size = 0x400, scoped, tag = 'output window, operand 0, single buffered']
    %18 = vsyncpa [#allocation4], 0
    %19 = vsyncpa [#allocation7], 0
    %20 = vsyncpa [#allocation10], 0
    %21 = vsyncpa [#allocation13], 0
    %22 = vsyncpa [#allocation5], 0
    // Predicated region
    $region2: #{tpu_custom_call.1} parent=1 // pred_check
      _
    $region3: #{tpu_custom_call.1} parent=1 // pred_check_branch
      %24 = sbr.rel (0) target = $region5
    $region4: #{tpu_custom_call.1} parent=1 // pred_region
      _
    $region5: #{tpu_custom_call.1} parent=1 // pred_fallthru
      _
    // Predicated region
    $region6: #{tpu_custom_call.1} parent=1 // pred_check
      _
    $region7: #{tpu_custom_call.1} parent=1 // pred_check_branch
      %26 = sbr.rel (0) target = $region9
    $region8: #{tpu_custom_call.1} parent=1 // pred_region
      _
    $region9: #{tpu_custom_call.1} parent=1 // pred_fallthru
      _
    // Predicated region
    $region10: #{tpu_custom_call.1} parent=1 // pred_check
      _
    $region11: #{tpu_custom_call.1} parent=1 // pred_check_branch
      %28 = sbr.rel (0) target = $region13
    $region12: #{tpu_custom_call.1} parent=1 // pred_region
      %s30 = ssub.s32 2048, 2048
      %31 = vsyncadd [#allocation4], %s30
      %s32 = sshll.u32 [#allocation3], 4
      %s33 = int_to_ptr.vmem [resolvable:$true] %s32
      %38 = dma.hbm_to_vmem [thread:$0]  %s2, 2048, %s33, [#allocation4], 512, 512, 32
    $region13: #{tpu_custom_call.1} parent=1 // pred_fallthru
      _
    // Predicated region
    $region14: #{tpu_custom_call.1} parent=1 // pred_check
      _
    $region15: #{tpu_custom_call.1} parent=1 // pred_check_branch
      %40 = sbr.rel (0) target = $region17
    $region16: #{tpu_custom_call.1} parent=1 // pred_region
      _
    $region17: #{tpu_custom_call.1} parent=1 // pred_fallthru
      _
    // Predicated region
    $region18: #{tpu_custom_call.1} parent=1 // pred_check
      _
    $region19: #{tpu_custom_call.1} parent=1 // pred_check_branch
      %42 = sbr.rel (0) target = $region21
    $region20: #{tpu_custom_call.1} parent=1 // pred_region
      %s44 = ssub.s32 8192, 8192
      %45 = vsyncadd [#allocation7], %s44
      %s46 = sshll.u32 [#allocation6], 4
      %s47 = int_to_ptr.vmem [resolvable:$true] %s46
      %52 = dma.hbm_to_vmem [thread:$0]  %s4, 8192, %s47, [#allocation7], 64, 64, 4
    $region21: #{tpu_custom_call.1} parent=1 // pred_fallthru
      _
    // Predicated region
    $region22: #{tpu_custom_call.1} parent=1 // pred_check
      _
    $region23: #{tpu_custom_call.1} parent=1 // pred_check_branch
      %54 = sbr.rel (0) target = $region25
    $region24: #{tpu_custom_call.1} parent=1 // pred_region
      %s56 = ssub.s32 16, 16
      %57 = vsyncadd [#allocation7], %s56
      %s59 = sshll.u32 [#allocation8], 4
      %s60 = int_to_ptr.vmem [resolvable:$true] %s59
      %62 = dma.hbm_to_vmem [thread:$0]  %s5, 16, %s60, [#allocation7]
    $region25: #{tpu_custom_call.1} parent=1 // pred_fallthru
      _
    // Predicated region
    $region26: #{tpu_custom_call.1} parent=1 // pred_check
      _
    $region27: #{tpu_custom_call.1} parent=1 // pred_check_branch
      %64 = sbr.rel (0) target = $region29
    $region28: #{tpu_custom_call.1} parent=1 // pred_region
      %s66 = ssub.s32 4096, 4096
      %67 = vsyncadd [#allocation10], %s66
      %s68 = sshll.u32 [#allocation9], 4
      %s69 = int_to_ptr.vmem [resolvable:$true] %s68
      %74 = dma.hbm_to_vmem [thread:$0]  %s6, 4096, %s69, [#allocation10], 256, 256, 16
    $region29: #{tpu_custom_call.1} parent=1 // pred_fallthru
      _
    // Predicated region
    $region30: #{tpu_custom_call.1} parent=1 // pred_check
      _
    $region31: #{tpu_custom_call.1} parent=1 // pred_check_branch
      %76 = sbr.rel (0) target = $region33
    $region32: #{tpu_custom_call.1} parent=1 // pred_region
      _
    $region33: #{tpu_custom_call.1} parent=1 // pred_fallthru
      _
    // Predicated region
    $region34: #{tpu_custom_call.1} parent=1 // pred_check
      _
    $region35: #{tpu_custom_call.1} parent=1 // pred_check_branch
      %78 = sbr.rel (0) target = $region37
    $region36: #{tpu_custom_call.1} parent=1 // pred_region
      %s80 = ssub.s32 16384, 16384
      %81 = vsyncadd [#allocation10], %s80
      %s82 = sshll.u32 [#allocation11], 4
      %s83 = int_to_ptr.vmem [resolvable:$true] %s82
      %88 = dma.hbm_to_vmem [thread:$0]  %s8, 16384, %s83, [#allocation10], 256, 256, 16
    $region37: #{tpu_custom_call.1} parent=1 // pred_fallthru
      _
    // Predicated region
    $region38: #{tpu_custom_call.1} parent=1 // pred_check
      _
    $region39: #{tpu_custom_call.1} parent=1 // pred_check_branch
      %90 = sbr.rel (0) target = $region41
    $region40: #{tpu_custom_call.1} parent=1 // pred_region
      _
    $region41: #{tpu_custom_call.1} parent=1 // pred_fallthru
      _
    // Predicated region
    $region42: #{tpu_custom_call.1} parent=1 // pred_check
      _
    $region43: #{tpu_custom_call.1} parent=1 // pred_check_branch
      %92 = sbr.rel (0) target = $region45
    $region44: #{tpu_custom_call.1} parent=1 // pred_region
      %s94 = ssub.s32 4096, 4096
      %95 = vsyncadd [#allocation13], %s94
      %s96 = sshll.u32 [#allocation12], 4
      %s97 = int_to_ptr.vmem [resolvable:$true] %s96
      %102 = dma.hbm_to_vmem [thread:$0]  %s10, 4096, %s97, [#allocation13], 64, 64, 4
    $region45: #{tpu_custom_call.1} parent=1 // pred_fallthru
      _
    // Predicated region
    $region46: #{tpu_custom_call.1} parent=1 // pred_check
      _
    $region47: #{tpu_custom_call.1} parent=1 // pred_check_branch
      %104 = sbr.rel (0) target = $region49
    $region48: #{tpu_custom_call.1} parent=1 // pred_region
      _
    $region49: #{tpu_custom_call.1} parent=1 // pred_fallthru
      _
    // Predicated region
    $region50: #{tpu_custom_call.1} parent=1 // pred_check
      _
    $region51: #{tpu_custom_call.1} parent=1 // pred_check_branch
      %106 = sbr.rel (0) target = $region53
    $region52: #{tpu_custom_call.1} parent=1 // pred_region
      %107 = dma.done [#allocation4], 2048
    $region53: #{tpu_custom_call.1} parent=1 // pred_fallthru
      _
    // Predicated region
    $region54: #{tpu_custom_call.1} parent=1 // pred_check
      _
    $region55: #{tpu_custom_call.1} parent=1 // pred_check_branch
      %109 = sbr.rel (0) target = $region57
    $region56: #{tpu_custom_call.1} parent=1 // pred_region
      %110 = dma.done [#allocation7], 8192
    $region57: #{tpu_custom_call.1} parent=1 // pred_fallthru
      _
    // Predicated region
    $region58: #{tpu_custom_call.1} parent=1 // pred_check
      _
    $region59: #{tpu_custom_call.1} parent=1 // pred_check_branch
      %112 = sbr.rel (0) target = $region61
    $region60: #{tpu_custom_call.1} parent=1 // pred_region
      %113 = dma.done [#allocation7], 16
    $region61: #{tpu_custom_call.1} parent=1 // pred_fallthru
      _
    // Predicated region
    $region62: #{tpu_custom_call.1} parent=1 // pred_check
      _
    $region63: #{tpu_custom_call.1} parent=1 // pred_check_branch
      %115 = sbr.rel (0) target = $region65
    $region64: #{tpu_custom_call.1} parent=1 // pred_region
      %116 = dma.done [#allocation10], 4096
    $region65: #{tpu_custom_call.1} parent=1 // pred_fallthru
      _
    // Predicated region
    $region66: #{tpu_custom_call.1} parent=1 // pred_check
      _
    $region67: #{tpu_custom_call.1} parent=1 // pred_check_branch
      %118 = sbr.rel (0) target = $region69
    $region68: #{tpu_custom_call.1} parent=1 // pred_region
      %119 = dma.done [#allocation10], 16384
    $region69: #{tpu_custom_call.1} parent=1 // pred_fallthru
      _
    // Predicated region
    $region70: #{tpu_custom_call.1} parent=1 // pred_check
      _
    $region71: #{tpu_custom_call.1} parent=1 // pred_check_branch
      %121 = sbr.rel (0) target = $region73
    $region72: #{tpu_custom_call.1} parent=1 // pred_region
      %122 = dma.done [#allocation13], 4096
    $region73: #{tpu_custom_call.1} parent=1 // pred_fallthru
      _
    %v124 = vld [vmem:[%s1] sm:$0x3]
    %v125 = vpack.c.bf16 %v124, %v124
    %v126 = vld [vmem:[#allocation3] sm:$0xff]
    %v127 = vld [vmem:[#allocation3 + $0x8] sm:$0xff]
    %v128 = vld [vmem:[#allocation3 + $0x10] sm:$0xff]
    %v129 = vld [vmem:[#allocation3 + $0x18] sm:$0xff]
    %v130 = vld [vmem:[#allocation3 + $0x20] sm:$0xff]
    %v131 = vld [vmem:[#allocation3 + $0x28] sm:$0xff]
    %v132 = vld [vmem:[#allocation3 + $0x30] sm:$0xff]
    %v133 = vld [vmem:[#allocation3 + $0x38] sm:$0xff]
    %v134 = vld [vmem:[#allocation3 + $0x40] sm:$0xff]
    %v135 = vld [vmem:[#allocation3 + $0x48] sm:$0xff]
    %v136 = vld [vmem:[#allocation3 + $0x50] sm:$0xff]
    %v137 = vld [vmem:[#allocation3 + $0x58] sm:$0xff]
    %v138 = vld [vmem:[#allocation3 + $0x60] sm:$0xff]
    %v139 = vld [vmem:[#allocation3 + $0x68] sm:$0xff]
    %v140 = vld [vmem:[#allocation3 + $0x70] sm:$0xff]
    %v141 = vld [vmem:[#allocation3 + $0x78] sm:$0xff]
    %v142 = vld [vmem:[%s3] sm:$0xff]
    %v144 = vlaneseq
    %v145 = vshrl.u32 %v144, 7
    %v146 = vsub.s32 0, %v145
    %v147 = vrot.slane %v142, %v146
    %v148 = vlaneseq
    %v149 = vshrl.u32 %v148, 7
    %v150 = vsub.s32 1, %v149
    %v151 = vrot.slane %v142, %v150
    %v152 = vlaneseq
    %v153 = vshrl.u32 %v152, 7
    %v154 = vsub.s32 2, %v153
    %v155 = vrot.slane %v142, %v154
    %v156 = vlaneseq
    %v157 = vshrl.u32 %v156, 7
    %v158 = vsub.s32 3, %v157
    %v159 = vrot.slane %v142, %v158
    %v160 = vlaneseq
    %v161 = vshrl.u32 %v160, 7
    %v162 = vsub.s32 4, %v161
    %v163 = vrot.slane %v142, %v162
    %v164 = vlaneseq
    %v165 = vshrl.u32 %v164, 7
    %v166 = vsub.s32 5, %v165
    %v167 = vrot.slane %v142, %v166
    %v168 = vlaneseq
    %v169 = vshrl.u32 %v168, 7
    %v170 = vsub.s32 6, %v169
    %v171 = vrot.slane %v142, %v170
    %v172 = vlaneseq
    %v173 = vshrl.u32 %v172, 7
    %v174 = vsub.s32 7, %v173
    %v175 = vrot.slane %v142, %v174
    %v200 = vunpack.c.l.b16 %v126
    %v201 = vunpack.c.h.b16 %v126
    %v202 = vunpack.c.l.b16 %v127
    %v203 = vunpack.c.h.b16 %v127
    %v204 = vunpack.c.l.b16 %v128
    %v205 = vunpack.c.h.b16 %v128
    %v206 = vunpack.c.l.b16 %v129
    %v207 = vunpack.c.h.b16 %v129
    %v208 = vunpack.c.l.b16 %v130
    %v209 = vunpack.c.h.b16 %v130
    %v210 = vunpack.c.l.b16 %v131
    %v211 = vunpack.c.h.b16 %v131
    %v212 = vunpack.c.l.b16 %v132
    %v213 = vunpack.c.h.b16 %v132
    %v214 = vunpack.c.l.b16 %v133
    %v215 = vunpack.c.h.b16 %v133
    %v216 = vunpack.c.l.b16 %v134
    %v217 = vunpack.c.h.b16 %v134
    %v218 = vunpack.c.l.b16 %v135
    %v219 = vunpack.c.h.b16 %v135
    %v220 = vunpack.c.l.b16 %v136
    %v221 = vunpack.c.h.b16 %v136
    %v222 = vunpack.c.l.b16 %v137
    %v223 = vunpack.c.h.b16 %v137
    %v224 = vunpack.c.l.b16 %v138
    %v225 = vunpack.c.h.b16 %v138
    %v226 = vunpack.c.l.b16 %v139
    %v227 = vunpack.c.h.b16 %v139
    %v228 = vunpack.c.l.b16 %v140
    %v229 = vunpack.c.h.b16 %v140
    %v230 = vunpack.c.l.b16 %v141
    %v231 = vunpack.c.h.b16 %v141
    %v232 = vpack.c.b16 %v208, %v200
    %v233 = vpack.c.b16 %v209, %v201
    %v234 = vpack.c.b16 %v210, %v202
    %v235 = vpack.c.b16 %v211, %v203
    %v236 = vpack.c.b16 %v212, %v204
    %v237 = vpack.c.b16 %v213, %v205
    %v238 = vpack.c.b16 %v214, %v206
    %v239 = vpack.c.b16 %v215, %v207
    %v240 = vpack.c.b16 %v224, %v216
    %v241 = vpack.c.b16 %v225, %v217
    %v242 = vpack.c.b16 %v226, %v218
    %v243 = vpack.c.b16 %v227, %v219
    %v244 = vpack.c.b16 %v228, %v220
    %v245 = vpack.c.b16 %v229, %v221
    %v246 = vpack.c.b16 %v230, %v222
    %v247 = vpack.c.b16 %v231, %v223
    %vm264 = vcmask 261120
    %v266 = vsel %vm264, %v125, 0
    %268 = vmatprep.subr.bf16.mxu0 %v233
    %269 = vmatpush1.bf16.msra.mxu0 %v232
    %270 = vmatprep.subr.bf16.mxu0 %v241
    %271 = vmatpush1.bf16.msra.mxu0 %v240
    %272 = vmatprep.subr.bf16.mxu0 0
    %273 = vmatpush1.bf16.msra.mxu0 0
    %274 = vmatprep.subr.bf16.mxu0 0
    %275 = vmatpush1.bf16.msra.mxu0 0
    %276 = vmatprep.subr.bf16.mxu0 0
    %277 = vmatpush1.bf16.msra.mxu0 0
    %278 = vmatprep.subr.bf16.mxu0 0
    %279 = vmatpush1.bf16.msra.mxu0 0
    %280 = vmatprep.subr.bf16.mxu0 0
    %281 = vmatpush1.bf16.msra.mxu0 0
    %282 = vmatprep.subr.bf16.mxu0 0
    %283 = vmatpush1.bf16.msra.mxu0 0
    %284 = vmatprep.subr.bf16.mxu0 0
    %285 = vmatpush1.bf16.msra.mxu0 0
    %286 = vmatprep.subr.bf16.mxu0 0
    %287 = vmatpush1.bf16.msra.mxu0 0
    %288 = vmatprep.subr.bf16.mxu0 0
    %289 = vmatpush1.bf16.msra.mxu0 0
    %290 = vmatprep.subr.bf16.mxu0 0
    %291 = vmatpush1.bf16.msra.mxu0 0
    %292 = vmatprep.subr.bf16.mxu0 0
    %293 = vmatpush1.bf16.msra.mxu0 0
    %294 = vmatprep.subr.bf16.mxu0 0
    %295 = vmatpush1.bf16.msra.mxu0 0
    %296 = vmatprep.subr.bf16.mxu0 0
    %297 = vmatpush1.bf16.msra.mxu0 0
    %298 = vmatprep.subr.bf16.mxu0 0
    %299 = vmatpush1.bf16.msra.mxu0 0
    %300 = vmatprep.mubr.bf16.mxu0 0
    %301 = vmatmul.mubr.bf16.gmra.mrb[0].mxu0 %v266
    %v302 = vpop.f32.mrb[0].mxu0
    %v303 = vadd.f32 %v147, %v302
    %v304 = vpop.f32.mrb[0].mxu0
    %v305 = vadd.f32 %v151, %v304
    %v306 = vpop.f32.mrb[0].mxu0
    %v307 = vpop.f32.mrb[0].mxu0
    %308 = vdwg.mxu0
    %309 = vmatprep.subr.bf16.mxu0 %v235
    %310 = vmatpush1.bf16.msra.mxu0 %v234
    %311 = vmatprep.subr.bf16.mxu0 %v243
    %312 = vmatpush1.bf16.msra.mxu0 %v242
    %313 = vmatprep.subr.bf16.mxu0 0
    %314 = vmatpush1.bf16.msra.mxu0 0
    %315 = vmatprep.subr.bf16.mxu0 0
    %316 = vmatpush1.bf16.msra.mxu0 0
    %317 = vmatprep.subr.bf16.mxu0 0
    %318 = vmatpush1.bf16.msra.mxu0 0
    %319 = vmatprep.subr.bf16.mxu0 0
    %320 = vmatpush1.bf16.msra.mxu0 0
    %321 = vmatprep.subr.bf16.mxu0 0
    %322 = vmatpush1.bf16.msra.mxu0 0
    %323 = vmatprep.subr.bf16.mxu0 0
    %324 = vmatpush1.bf16.msra.mxu0 0
    %325 = vmatprep.subr.bf16.mxu0 0
    %326 = vmatpush1.bf16.msra.mxu0 0
    %327 = vmatprep.subr.bf16.mxu0 0
    %328 = vmatpush1.bf16.msra.mxu0 0
    %329 = vmatprep.subr.bf16.mxu0 0
    %330 = vmatpush1.bf16.msra.mxu0 0
    %331 = vmatprep.subr.bf16.mxu0 0
    %332 = vmatpush1.bf16.msra.mxu0 0
    %333 = vmatprep.subr.bf16.mxu0 0
    %334 = vmatpush1.bf16.msra.mxu0 0
    %335 = vmatprep.subr.bf16.mxu0 0
    %336 = vmatpush1.bf16.msra.mxu0 0
    %337 = vmatprep.subr.bf16.mxu0 0
    %338 = vmatpush1.bf16.msra.mxu0 0
    %339 = vmatprep.subr.bf16.mxu0 0
    %340 = vmatpush1.bf16.msra.mxu0 0
    %341 = vmatprep.mubr.bf16.mxu0 0
    %342 = vmatmul.mubr.bf16.gmra.mrb[0].mxu0 %v266
    %v343 = vpop.f32.mrb[0].mxu0
    %v344 = vadd.f32 %v155, %v343
    %v345 = vpop.f32.mrb[0].mxu0
    %v346 = vadd.f32 %v159, %v345
    %v347 = vpop.f32.mrb[0].mxu0
    %v348 = vpop.f32.mrb[0].mxu0
    %349 = vdwg.mxu0
    %350 = vmatprep.subr.bf16.mxu0 %v237
    %351 = vmatpush1.bf16.msra.mxu0 %v236
    %352 = vmatprep.subr.bf16.mxu0 %v245
    %353 = vmatpush1.bf16.msra.mxu0 %v244
    %354 = vmatprep.subr.bf16.mxu0 0
    %355 = vmatpush1.bf16.msra.mxu0 0
    %356 = vmatprep.subr.bf16.mxu0 0
    %357 = vmatpush1.bf16.msra.mxu0 0
    %358 = vmatprep.subr.bf16.mxu0 0
    %359 = vmatpush1.bf16.msra.mxu0 0
    %360 = vmatprep.subr.bf16.mxu0 0
    %361 = vmatpush1.bf16.msra.mxu0 0
    %362 = vmatprep.subr.bf16.mxu0 0
    %363 = vmatpush1.bf16.msra.mxu0 0
    %364 = vmatprep.subr.bf16.mxu0 0
    %365 = vmatpush1.bf16.msra.mxu0 0
    %366 = vmatprep.subr.bf16.mxu0 0
    %367 = vmatpush1.bf16.msra.mxu0 0
    %368 = vmatprep.subr.bf16.mxu0 0
    %369 = vmatpush1.bf16.msra.mxu0 0
    %370 = vmatprep.subr.bf16.mxu0 0
    %371 = vmatpush1.bf16.msra.mxu0 0
    %372 = vmatprep.subr.bf16.mxu0 0
    %373 = vmatpush1.bf16.msra.mxu0 0
    %374 = vmatprep.subr.bf16.mxu0 0
    %375 = vmatpush1.bf16.msra.mxu0 0
    %376 = vmatprep.subr.bf16.mxu0 0
    %377 = vmatpush1.bf16.msra.mxu0 0
    %378 = vmatprep.subr.bf16.mxu0 0
    %379 = vmatpush1.bf16.msra.mxu0 0
    %380 = vmatprep.subr.bf16.mxu0 0
    %381 = vmatpush1.bf16.msra.mxu0 0
    %382 = vmatprep.mubr.bf16.mxu0 0
    %383 = vmatmul.mubr.bf16.gmra.mrb[0].mxu0 %v266
    %v384 = vpop.f32.mrb[0].mxu0
    %v385 = vadd.f32 %v163, %v384
    %v386 = vpop.f32.mrb[0].mxu0
    %v387 = vadd.f32 %v167, %v386
    %v388 = vpop.f32.mrb[0].mxu0
    %v389 = vpop.f32.mrb[0].mxu0
    %390 = vdwg.mxu0
    %391 = vmatprep.subr.bf16.mxu0 %v239
    %392 = vmatpush1.bf16.msra.mxu0 %v238
    %393 = vmatprep.subr.bf16.mxu0 %v247
    %394 = vmatpush1.bf16.msra.mxu0 %v246
    %395 = vmatprep.subr.bf16.mxu0 0
    %396 = vmatpush1.bf16.msra.mxu0 0
    %397 = vmatprep.subr.bf16.mxu0 0
    %398 = vmatpush1.bf16.msra.mxu0 0
    %399 = vmatprep.subr.bf16.mxu0 0
    %400 = vmatpush1.bf16.msra.mxu0 0
    %401 = vmatprep.subr.bf16.mxu0 0
    %402 = vmatpush1.bf16.msra.mxu0 0
    %403 = vmatprep.subr.bf16.mxu0 0
    %404 = vmatpush1.bf16.msra.mxu0 0
    %405 = vmatprep.subr.bf16.mxu0 0
    %406 = vmatpush1.bf16.msra.mxu0 0
    %407 = vmatprep.subr.bf16.mxu0 0
    %408 = vmatpush1.bf16.msra.mxu0 0
    %409 = vmatprep.subr.bf16.mxu0 0
    %410 = vmatpush1.bf16.msra.mxu0 0
    %411 = vmatprep.subr.bf16.mxu0 0
    %412 = vmatpush1.bf16.msra.mxu0 0
    %413 = vmatprep.subr.bf16.mxu0 0
    %414 = vmatpush1.bf16.msra.mxu0 0
    %415 = vmatprep.subr.bf16.mxu0 0
    %416 = vmatpush1.bf16.msra.mxu0 0
    %417 = vmatprep.subr.bf16.mxu0 0
    %418 = vmatpush1.bf16.msra.mxu0 0
    %419 = vmatprep.subr.bf16.mxu0 0
    %420 = vmatpush1.bf16.msra.mxu0 0
    %421 = vmatprep.subr.bf16.mxu0 0
    %422 = vmatpush1.bf16.msra.mxu0 0
    %423 = vmatprep.mubr.bf16.mxu0 0
    %424 = vmatmul.mubr.bf16.gmra.mrb[0].mxu0 %v266
    %v425 = vpop.f32.mrb[0].mxu0
    %v426 = vadd.f32 %v171, %v425
    %v427 = vpop.f32.mrb[0].mxu0
    %v428 = vadd.f32 %v175, %v427
    %v429 = vpop.f32.mrb[0].mxu0
    %v430 = vpop.f32.mrb[0].mxu0
    %431 = vdwg.mxu0
    %v432 = vmax.f32 %v303, 0.0
    %v433 = vmax.f32 %v305, 0.0
    %v434 = vmax.f32 %v344, 0.0
    %v435 = vmax.f32 %v346, 0.0
    %v436 = vmax.f32 %v385, 0.0
    %v437 = vmax.f32 %v387, 0.0
    %v438 = vmax.f32 %v426, 0.0
    %v439 = vmax.f32 %v428, 0.0
    %v440 = vpack.c.bf16 %v432, %v432
    %v441 = vpack.c.bf16 %v433, %v433
    %v442 = vpack.c.bf16 %v434, %v434
    %v443 = vpack.c.bf16 %v435, %v435
    %v444 = vpack.c.bf16 %v436, %v436
    %v445 = vpack.c.bf16 %v437, %v437
    %v446 = vpack.c.bf16 %v438, %v438
    %v447 = vpack.c.bf16 %v439, %v439
    %v448 = vld [vmem:[#allocation6] sm:$0xf]
    %v449 = vld [vmem:[#allocation6 + $0x4] sm:$0xf]
    %v450 = vld [vmem:[#allocation6 + $0x8] sm:$0xf]
    %v451 = vld [vmem:[#allocation6 + $0xc] sm:$0xf]
    %v452 = vld [vmem:[#allocation6 + $0x10] sm:$0xf]
    %v453 = vld [vmem:[#allocation6 + $0x14] sm:$0xf]
    %v454 = vld [vmem:[#allocation6 + $0x18] sm:$0xf]
    %v455 = vld [vmem:[#allocation6 + $0x1c] sm:$0xf]
    %v456 = vld [vmem:[#allocation6 + $0x20] sm:$0xf]
    %v457 = vld [vmem:[#allocation6 + $0x24] sm:$0xf]
    %v458 = vld [vmem:[#allocation6 + $0x28] sm:$0xf]
    %v459 = vld [vmem:[#allocation6 + $0x2c] sm:$0xf]
    %v460 = vld [vmem:[#allocation6 + $0x30] sm:$0xf]
    %v461 = vld [vmem:[#allocation6 + $0x34] sm:$0xf]
    %v462 = vld [vmem:[#allocation6 + $0x38] sm:$0xf]
    %v463 = vld [vmem:[#allocation6 + $0x3c] sm:$0xf]
    %v464 = vld [vmem:[#allocation6 + $0x40] sm:$0xf]
    %v465 = vld [vmem:[#allocation6 + $0x44] sm:$0xf]
    %v466 = vld [vmem:[#allocation6 + $0x48] sm:$0xf]
    %v467 = vld [vmem:[#allocation6 + $0x4c] sm:$0xf]
    %v468 = vld [vmem:[#allocation6 + $0x50] sm:$0xf]
    %v469 = vld [vmem:[#allocation6 + $0x54] sm:$0xf]
    %v470 = vld [vmem:[#allocation6 + $0x58] sm:$0xf]
    %v471 = vld [vmem:[#allocation6 + $0x5c] sm:$0xf]
    %v472 = vld [vmem:[#allocation6 + $0x60] sm:$0xf]
    %v473 = vld [vmem:[#allocation6 + $0x64] sm:$0xf]
    %v474 = vld [vmem:[#allocation6 + $0x68] sm:$0xf]
    %v475 = vld [vmem:[#allocation6 + $0x6c] sm:$0xf]
    %v476 = vld [vmem:[#allocation6 + $0x70] sm:$0xf]
    %v477 = vld [vmem:[#allocation6 + $0x74] sm:$0xf]
    %v478 = vld [vmem:[#allocation6 + $0x78] sm:$0xf]
    %v479 = vld [vmem:[#allocation6 + $0x7c] sm:$0xf]
    %v480 = vld [vmem:[#allocation6 + $0x80] sm:$0xf]
    %v481 = vld [vmem:[#allocation6 + $0x84] sm:$0xf]
    %v482 = vld [vmem:[#allocation6 + $0x88] sm:$0xf]
    %v483 = vld [vmem:[#allocation6 + $0x8c] sm:$0xf]
    %v484 = vld [vmem:[#allocation6 + $0x90] sm:$0xf]
    %v485 = vld [vmem:[#allocation6 + $0x94] sm:$0xf]
    %v486 = vld [vmem:[#allocation6 + $0x98] sm:$0xf]
    %v487 = vld [vmem:[#allocation6 + $0x9c] sm:$0xf]
    %v488 = vld [vmem:[#allocation6 + $0xa0] sm:$0xf]
    %v489 = vld [vmem:[#allocation6 + $0xa4] sm:$0xf]
    %v490 = vld [vmem:[#allocation6 + $0xa8] sm:$0xf]
    %v491 = vld [vmem:[#allocation6 + $0xac] sm:$0xf]
    %v492 = vld [vmem:[#allocation6 + $0xb0] sm:$0xf]
    %v493 = vld [vmem:[#allocation6 + $0xb4] sm:$0xf]
    %v494 = vld [vmem:[#allocation6 + $0xb8] sm:$0xf]
    %v495 = vld [vmem:[#allocation6 + $0xbc] sm:$0xf]
    %v496 = vld [vmem:[#allocation6 + $0xc0] sm:$0xf]
    %v497 = vld [vmem:[#allocation6 + $0xc4] sm:$0xf]
    %v498 = vld [vmem:[#allocation6 + $0xc8] sm:$0xf]
    %v499 = vld [vmem:[#allocation6 + $0xcc] sm:$0xf]
    %v500 = vld [vmem:[#allocation6 + $0xd0] sm:$0xf]
    %v501 = vld [vmem:[#allocation6 + $0xd4] sm:$0xf]
    %v502 = vld [vmem:[#allocation6 + $0xd8] sm:$0xf]
    %v503 = vld [vmem:[#allocation6 + $0xdc] sm:$0xf]
    %v504 = vld [vmem:[#allocation6 + $0xe0] sm:$0xf]
    %v505 = vld [vmem:[#allocation6 + $0xe4] sm:$0xf]
    %v506 = vld [vmem:[#allocation6 + $0xe8] sm:$0xf]
    %v507 = vld [vmem:[#allocation6 + $0xec] sm:$0xf]
    %v508 = vld [vmem:[#allocation6 + $0xf0] sm:$0xf]
    %v509 = vld [vmem:[#allocation6 + $0xf4] sm:$0xf]
    %v510 = vld [vmem:[#allocation6 + $0xf8] sm:$0xf]
    %v511 = vld [vmem:[#allocation6 + $0xfc] sm:$0xf]
    %v512 = vld [vmem:[#allocation6 + $0x100] sm:$0xf]
    %v513 = vld [vmem:[#allocation6 + $0x104] sm:$0xf]
    %v514 = vld [vmem:[#allocation6 + $0x108] sm:$0xf]
    %v515 = vld [vmem:[#allocation6 + $0x10c] sm:$0xf]
    %v516 = vld [vmem:[#allocation6 + $0x110] sm:$0xf]
    %v517 = vld [vmem:[#allocation6 + $0x114] sm:$0xf]
    %v518 = vld [vmem:[#allocation6 + $0x118] sm:$0xf]
    %v519 = vld [vmem:[#allocation6 + $0x11c] sm:$0xf]
    %v520 = vld [vmem:[#allocation6 + $0x120] sm:$0xf]
    %v521 = vld [vmem:[#allocation6 + $0x124] sm:$0xf]
    %v522 = vld [vmem:[#allocation6 + $0x128] sm:$0xf]
    %v523 = vld [vmem:[#allocation6 + $0x12c] sm:$0xf]
    %v524 = vld [vmem:[#allocation6 + $0x130] sm:$0xf]
    %v525 = vld [vmem:[#allocation6 + $0x134] sm:$0xf]
    %v526 = vld [vmem:[#allocation6 + $0x138] sm:$0xf]
    %v527 = vld [vmem:[#allocation6 + $0x13c] sm:$0xf]
    %v528 = vld [vmem:[#allocation6 + $0x140] sm:$0xf]
    %v529 = vld [vmem:[#allocation6 + $0x144] sm:$0xf]
    %v530 = vld [vmem:[#allocation6 + $0x148] sm:$0xf]
    %v531 = vld [vmem:[#allocation6 + $0x14c] sm:$0xf]
    %v532 = vld [vmem:[#allocation6 + $0x150] sm:$0xf]
    %v533 = vld [vmem:[#allocation6 + $0x154] sm:$0xf]
    %v534 = vld [vmem:[#allocation6 + $0x158] sm:$0xf]
    %v535 = vld [vmem:[#allocation6 + $0x15c] sm:$0xf]
    %v536 = vld [vmem:[#allocation6 + $0x160] sm:$0xf]
    %v537 = vld [vmem:[#allocation6 + $0x164] sm:$0xf]
    %v538 = vld [vmem:[#allocation6 + $0x168] sm:$0xf]
    %v539 = vld [vmem:[#allocation6 + $0x16c] sm:$0xf]
    %v540 = vld [vmem:[#allocation6 + $0x170] sm:$0xf]
    %v541 = vld [vmem:[#allocation6 + $0x174] sm:$0xf]
    %v542 = vld [vmem:[#allocation6 + $0x178] sm:$0xf]
    %v543 = vld [vmem:[#allocation6 + $0x17c] sm:$0xf]
    %v544 = vld [vmem:[#allocation6 + $0x180] sm:$0xf]
    %v545 = vld [vmem:[#allocation6 + $0x184] sm:$0xf]
    %v546 = vld [vmem:[#allocation6 + $0x188] sm:$0xf]
    %v547 = vld [vmem:[#allocation6 + $0x18c] sm:$0xf]
    %v548 = vld [vmem:[#allocation6 + $0x190] sm:$0xf]
    %v549 = vld [vmem:[#allocation6 + $0x194] sm:$0xf]
    %v550 = vld [vmem:[#allocation6 + $0x198] sm:$0xf]
    %v551 = vld [vmem:[#allocation6 + $0x19c] sm:$0xf]
    %v552 = vld [vmem:[#allocation6 + $0x1a0] sm:$0xf]
    %v553 = vld [vmem:[#allocation6 + $0x1a4] sm:$0xf]
    %v554 = vld [vmem:[#allocation6 + $0x1a8] sm:$0xf]
    %v555 = vld [vmem:[#allocation6 + $0x1ac] sm:$0xf]
    %v556 = vld [vmem:[#allocation6 + $0x1b0] sm:$0xf]
    %v557 = vld [vmem:[#allocation6 + $0x1b4] sm:$0xf]
    %v558 = vld [vmem:[#allocation6 + $0x1b8] sm:$0xf]
    %v559 = vld [vmem:[#allocation6 + $0x1bc] sm:$0xf]
    %v560 = vld [vmem:[#allocation6 + $0x1c0] sm:$0xf]
    %v561 = vld [vmem:[#allocation6 + $0x1c4] sm:$0xf]
    %v562 = vld [vmem:[#allocation6 + $0x1c8] sm:$0xf]
    %v563 = vld [vmem:[#allocation6 + $0x1cc] sm:$0xf]
    %v564 = vld [vmem:[#allocation6 + $0x1d0] sm:$0xf]
    %v565 = vld [vmem:[#allocation6 + $0x1d4] sm:$0xf]
    %v566 = vld [vmem:[#allocation6 + $0x1d8] sm:$0xf]
    %v567 = vld [vmem:[#allocation6 + $0x1dc] sm:$0xf]
    %v568 = vld [vmem:[#allocation6 + $0x1e0] sm:$0xf]
    %v569 = vld [vmem:[#allocation6 + $0x1e4] sm:$0xf]
    %v570 = vld [vmem:[#allocation6 + $0x1e8] sm:$0xf]
    %v571 = vld [vmem:[#allocation6 + $0x1ec] sm:$0xf]
    %v572 = vld [vmem:[#allocation6 + $0x1f0] sm:$0xf]
    %v573 = vld [vmem:[#allocation6 + $0x1f4] sm:$0xf]
    %v574 = vld [vmem:[#allocation6 + $0x1f8] sm:$0xf]
    %v575 = vld [vmem:[#allocation6 + $0x1fc] sm:$0xf]
    %v576 = vld [vmem:[#allocation8] sm:$0x1]
    %v578 = vlaneseq
    %v579 = vshrl.u32 %v578, 7
    %v580 = vsub.s32 0, %v579
    %v581 = vrot.slane %v576, %v580
    %v711 = vunpack.c.l.b16 %v448
    %v712 = vunpack.c.l.b16 %v449
    %v713 = vunpack.c.l.b16 %v450
    %v714 = vunpack.c.l.b16 %v451
    %v715 = vunpack.c.l.b16 %v452
    %v716 = vunpack.c.l.b16 %v453
    %v717 = vunpack.c.l.b16 %v454
    %v718 = vunpack.c.l.b16 %v455
    %v719 = vunpack.c.l.b16 %v456
    %v720 = vunpack.c.l.b16 %v457
    %v721 = vunpack.c.l.b16 %v458
    %v722 = vunpack.c.l.b16 %v459
    %v723 = vunpack.c.l.b16 %v460
    %v724 = vunpack.c.l.b16 %v461
    %v725 = vunpack.c.l.b16 %v462
    %v726 = vunpack.c.l.b16 %v463
    %v727 = vunpack.c.l.b16 %v464
    %v728 = vunpack.c.l.b16 %v465
    %v729 = vunpack.c.l.b16 %v466
    %v730 = vunpack.c.l.b16 %v467
    %v731 = vunpack.c.l.b16 %v468
    %v732 = vunpack.c.l.b16 %v469
    %v733 = vunpack.c.l.b16 %v470
    %v734 = vunpack.c.l.b16 %v471
    %v735 = vunpack.c.l.b16 %v472
    %v736 = vunpack.c.l.b16 %v473
    %v737 = vunpack.c.l.b16 %v474
    %v738 = vunpack.c.l.b16 %v475
    %v739 = vunpack.c.l.b16 %v476
    %v740 = vunpack.c.l.b16 %v477
    %v741 = vunpack.c.l.b16 %v478
    %v742 = vunpack.c.l.b16 %v479
    %v743 = vunpack.c.l.b16 %v480
    %v744 = vunpack.c.l.b16 %v481
    %v745 = vunpack.c.l.b16 %v482
    %v746 = vunpack.c.l.b16 %v483
    %v747 = vunpack.c.l.b16 %v484
    %v748 = vunpack.c.l.b16 %v485
    %v749 = vunpack.c.l.b16 %v486
    %v750 = vunpack.c.l.b16 %v487
    %v751 = vunpack.c.l.b16 %v488
    %v752 = vunpack.c.l.b16 %v489
    %v753 = vunpack.c.l.b16 %v490
    %v754 = vunpack.c.l.b16 %v491
    %v755 = vunpack.c.l.b16 %v492
    %v756 = vunpack.c.l.b16 %v493
    %v757 = vunpack.c.l.b16 %v494
    %v758 = vunpack.c.l.b16 %v495
    %v759 = vunpack.c.l.b16 %v496
    %v760 = vunpack.c.l.b16 %v497
    %v761 = vunpack.c.l.b16 %v498
    %v762 = vunpack.c.l.b16 %v499
    %v763 = vunpack.c.l.b16 %v500
    %v764 = vunpack.c.l.b16 %v501
    %v765 = vunpack.c.l.b16 %v502
    %v766 = vunpack.c.l.b16 %v503
    %v767 = vunpack.c.l.b16 %v504
    %v768 = vunpack.c.l.b16 %v505
    %v769 = vunpack.c.l.b16 %v506
    %v770 = vunpack.c.l.b16 %v507
    %v771 = vunpack.c.l.b16 %v508
    %v772 = vunpack.c.l.b16 %v509
    %v773 = vunpack.c.l.b16 %v510
    %v774 = vunpack.c.l.b16 %v511
    %v775 = vunpack.c.l.b16 %v512
    %v776 = vunpack.c.l.b16 %v513
    %v777 = vunpack.c.l.b16 %v514
    %v778 = vunpack.c.l.b16 %v515
    %v779 = vunpack.c.l.b16 %v516
    %v780 = vunpack.c.l.b16 %v517
    %v781 = vunpack.c.l.b16 %v518
    %v782 = vunpack.c.l.b16 %v519
    %v783 = vunpack.c.l.b16 %v520
    %v784 = vunpack.c.l.b16 %v521
    %v785 = vunpack.c.l.b16 %v522
    %v786 = vunpack.c.l.b16 %v523
    %v787 = vunpack.c.l.b16 %v524
    %v788 = vunpack.c.l.b16 %v525
    %v789 = vunpack.c.l.b16 %v526
    %v790 = vunpack.c.l.b16 %v527
    %v791 = vunpack.c.l.b16 %v528
    %v792 = vunpack.c.l.b16 %v529
    %v793 = vunpack.c.l.b16 %v530
    %v794 = vunpack.c.l.b16 %v531
    %v795 = vunpack.c.l.b16 %v532
    %v796 = vunpack.c.l.b16 %v533
    %v797 = vunpack.c.l.b16 %v534
    %v798 = vunpack.c.l.b16 %v535
    %v799 = vunpack.c.l.b16 %v536
    %v800 = vunpack.c.l.b16 %v537
    %v801 = vunpack.c.l.b16 %v538
    %v802 = vunpack.c.l.b16 %v539
    %v803 = vunpack.c.l.b16 %v540
    %v804 = vunpack.c.l.b16 %v541
    %v805 = vunpack.c.l.b16 %v542
    %v806 = vunpack.c.l.b16 %v543
    %v807 = vunpack.c.l.b16 %v544
    %v808 = vunpack.c.l.b16 %v545
    %v809 = vunpack.c.l.b16 %v546
    %v810 = vunpack.c.l.b16 %v547
    %v811 = vunpack.c.l.b16 %v548
    %v812 = vunpack.c.l.b16 %v549
    %v813 = vunpack.c.l.b16 %v550
    %v814 = vunpack.c.l.b16 %v551
    %v815 = vunpack.c.l.b16 %v552
    %v816 = vunpack.c.l.b16 %v553
    %v817 = vunpack.c.l.b16 %v554
    %v818 = vunpack.c.l.b16 %v555
    %v819 = vunpack.c.l.b16 %v556
    %v820 = vunpack.c.l.b16 %v557
    %v821 = vunpack.c.l.b16 %v558
    %v822 = vunpack.c.l.b16 %v559
    %v823 = vunpack.c.l.b16 %v560
    %v824 = vunpack.c.l.b16 %v561
    %v825 = vunpack.c.l.b16 %v562
    %v826 = vunpack.c.l.b16 %v563
    %v827 = vunpack.c.l.b16 %v564
    %v828 = vunpack.c.l.b16 %v565
    %v829 = vunpack.c.l.b16 %v566
    %v830 = vunpack.c.l.b16 %v567
    %v831 = vunpack.c.l.b16 %v568
    %v832 = vunpack.c.l.b16 %v569
    %v833 = vunpack.c.l.b16 %v570
    %v834 = vunpack.c.l.b16 %v571
    %v835 = vunpack.c.l.b16 %v572
    %v836 = vunpack.c.l.b16 %v573
    %v837 = vunpack.c.l.b16 %v574
    %v838 = vunpack.c.l.b16 %v575
    %v839 = vpack.c.b16 %v712, %v711
    %v840 = vpack.c.b16 %v714, %v713
    %v841 = vpack.c.b16 %v716, %v715
    %v842 = vpack.c.b16 %v718, %v717
    %v843 = vpack.c.b16 %v720, %v719
    %v844 = vpack.c.b16 %v722, %v721
    %v845 = vpack.c.b16 %v724, %v723
    %v846 = vpack.c.b16 %v726, %v725
    %v847 = vpack.c.b16 %v728, %v727
    %v848 = vpack.c.b16 %v730, %v729
    %v849 = vpack.c.b16 %v732, %v731
    %v850 = vpack.c.b16 %v734, %v733
    %v851 = vpack.c.b16 %v736, %v735
    %v852 = vpack.c.b16 %v738, %v737
    %v853 = vpack.c.b16 %v740, %v739
    %v854 = vpack.c.b16 %v742, %v741
    %v855 = vpack.c.b16 %v744, %v743
    %v856 = vpack.c.b16 %v746, %v745
    %v857 = vpack.c.b16 %v748, %v747
    %v858 = vpack.c.b16 %v750, %v749
    %v859 = vpack.c.b16 %v752, %v751
    %v860 = vpack.c.b16 %v754, %v753
    %v861 = vpack.c.b16 %v756, %v755
    %v862 = vpack.c.b16 %v758, %v757
    %v863 = vpack.c.b16 %v760, %v759
    %v864 = vpack.c.b16 %v762, %v761
    %v865 = vpack.c.b16 %v764, %v763
    %v866 = vpack.c.b16 %v766, %v765
    %v867 = vpack.c.b16 %v768, %v767
    %v868 = vpack.c.b16 %v770, %v769
    %v869 = vpack.c.b16 %v772, %v771
    %v870 = vpack.c.b16 %v774, %v773
    %v871 = vpack.c.b16 %v776, %v775
    %v872 = vpack.c.b16 %v778, %v777
    %v873 = vpack.c.b16 %v780, %v779
    %v874 = vpack.c.b16 %v782, %v781
    %v875 = vpack.c.b16 %v784, %v783
    %v876 = vpack.c.b16 %v786, %v785
    %v877 = vpack.c.b16 %v788, %v787
    %v878 = vpack.c.b16 %v790, %v789
    %v879 = vpack.c.b16 %v792, %v791
    %v880 = vpack.c.b16 %v794, %v793
    %v881 = vpack.c.b16 %v796, %v795
    %v882 = vpack.c.b16 %v798, %v797
    %v883 = vpack.c.b16 %v800, %v799
    %v884 = vpack.c.b16 %v802, %v801
    %v885 = vpack.c.b16 %v804, %v803
    %v886 = vpack.c.b16 %v806, %v805
    %v887 = vpack.c.b16 %v808, %v807
    %v888 = vpack.c.b16 %v810, %v809
    %v889 = vpack.c.b16 %v812, %v811
    %v890 = vpack.c.b16 %v814, %v813
    %v891 = vpack.c.b16 %v816, %v815
    %v892 = vpack.c.b16 %v818, %v817
    %v893 = vpack.c.b16 %v820, %v819
    %v894 = vpack.c.b16 %v822, %v821
    %v895 = vpack.c.b16 %v824, %v823
    %v896 = vpack.c.b16 %v826, %v825
    %v897 = vpack.c.b16 %v828, %v827
    %v898 = vpack.c.b16 %v830, %v829
    %v899 = vpack.c.b16 %v832, %v831
    %v900 = vpack.c.b16 %v834, %v833
    %v901 = vpack.c.b16 %v836, %v835
    %v902 = vpack.c.b16 %v838, %v837
    %967 = vmatprep.subr.bf16.mxu0 0
    %968 = vmatpush1.bf16.msra.mxu0 %v839
    %969 = vmatprep.subr.bf16.mxu0 0
    %970 = vmatpush1.bf16.msra.mxu0 %v840
    %971 = vmatprep.subr.bf16.mxu0 0
    %972 = vmatpush1.bf16.msra.mxu0 %v841
    %973 = vmatprep.subr.bf16.mxu0 0
    %974 = vmatpush1.bf16.msra.mxu0 %v842
    %975 = vmatprep.subr.bf16.mxu0 0
    %976 = vmatpush1.bf16.msra.mxu0 %v843
    %977 = vmatprep.subr.bf16.mxu0 0
    %978 = vmatpush1.bf16.msra.mxu0 %v844
    %979 = vmatprep.subr.bf16.mxu0 0
    %980 = vmatpush1.bf16.msra.mxu0 %v845
    %981 = vmatprep.subr.bf16.mxu0 0
    %982 = vmatpush1.bf16.msra.mxu0 %v846
    %983 = vmatprep.subr.bf16.mxu0 0
    %984 = vmatpush1.bf16.msra.mxu0 %v847
    %985 = vmatprep.subr.bf16.mxu0 0
    %986 = vmatpush1.bf16.msra.mxu0 %v848
    %987 = vmatprep.subr.bf16.mxu0 0
    %988 = vmatpush1.bf16.msra.mxu0 %v849
    %989 = vmatprep.subr.bf16.mxu0 0
    %990 = vmatpush1.bf16.msra.mxu0 %v850
    %991 = vmatprep.subr.bf16.mxu0 0
    %992 = vmatpush1.bf16.msra.mxu0 %v851
    %993 = vmatprep.subr.bf16.mxu0 0
    %994 = vmatpush1.bf16.msra.mxu0 %v852
    %995 = vmatprep.subr.bf16.mxu0 0
    %996 = vmatpush1.bf16.msra.mxu0 %v853
    %997 = vmatprep.subr.bf16.mxu0 0
    %998 = vmatpush1.bf16.msra.mxu0 %v854
    %999 = vmatprep.mubr.bf16.mxu0 %v441
    %1000 = vmatmul.mubr.bf16.gmra.mrb[0].mxu0 %v440
    %v1001 = vpop.f32.mrb[0].mxu0
    %v1002 = vadd.f32 %v581, %v1001
    %v1003 = vpop.f32.mrb[0].mxu0
    %v1004 = vpop.f32.mrb[0].mxu0
    %v1005 = vpop.f32.mrb[0].mxu0
    %1006 = vdwg.mxu0
    %1007 = vmatprep.subr.bf16.mxu0 0
    %1008 = vmatpush1.bf16.msra.mxu0 %v855
    %1009 = vmatprep.subr.bf16.mxu0 0
    %1010 = vmatpush1.bf16.msra.mxu0 %v856
    %1011 = vmatprep.subr.bf16.mxu0 0
    %1012 = vmatpush1.bf16.msra.mxu0 %v857
    %1013 = vmatprep.subr.bf16.mxu0 0
    %1014 = vmatpush1.bf16.msra.mxu0 %v858
    %1015 = vmatprep.subr.bf16.mxu0 0
    %1016 = vmatpush1.bf16.msra.mxu0 %v859
    %1017 = vmatprep.subr.bf16.mxu0 0
    %1018 = vmatpush1.bf16.msra.mxu0 %v860
    %1019 = vmatprep.subr.bf16.mxu0 0
    %1020 = vmatpush1.bf16.msra.mxu0 %v861
    %1021 = vmatprep.subr.bf16.mxu0 0
    %1022 = vmatpush1.bf16.msra.mxu0 %v862
    %1023 = vmatprep.subr.bf16.mxu0 0
    %1024 = vmatpush1.bf16.msra.mxu0 %v863
    %1025 = vmatprep.subr.bf16.mxu0 0
    %1026 = vmatpush1.bf16.msra.mxu0 %v864
    %1027 = vmatprep.subr.bf16.mxu0 0
    %1028 = vmatpush1.bf16.msra.mxu0 %v865
    %1029 = vmatprep.subr.bf16.mxu0 0
    %1030 = vmatpush1.bf16.msra.mxu0 %v866
    %1031 = vmatprep.subr.bf16.mxu0 0
    %1032 = vmatpush1.bf16.msra.mxu0 %v867
    %1033 = vmatprep.subr.bf16.mxu0 0
    %1034 = vmatpush1.bf16.msra.mxu0 %v868
    %1035 = vmatprep.subr.bf16.mxu0 0
    %1036 = vmatpush1.bf16.msra.mxu0 %v869
    %1037 = vmatprep.subr.bf16.mxu0 0
    %1038 = vmatpush1.bf16.msra.mxu0 %v870
    %1039 = vmatprep.mubr.bf16.mxu0 %v443
    %1040 = vmatmul.mubr.bf16.gmra.mrb[0].mxu0 %v442
    %v1041 = vpop.f32.mrb[0].mxu0
    %v1042 = vadd.f32 %v1002, %v1041
    %v1043 = vpop.f32.mrb[0].mxu0
    %v1044 = vpop.f32.mrb[0].mxu0
    %v1045 = vpop.f32.mrb[0].mxu0
    %1046 = vdwg.mxu0
    %1047 = vmatprep.subr.bf16.mxu0 0
    %1048 = vmatpush1.bf16.msra.mxu0 %v871
    %1049 = vmatprep.subr.bf16.mxu0 0
    %1050 = vmatpush1.bf16.msra.mxu0 %v872
    %1051 = vmatprep.subr.bf16.mxu0 0
    %1052 = vmatpush1.bf16.msra.mxu0 %v873
    %1053 = vmatprep.subr.bf16.mxu0 0
    %1054 = vmatpush1.bf16.msra.mxu0 %v874
    %1055 = vmatprep.subr.bf16.mxu0 0
    %1056 = vmatpush1.bf16.msra.mxu0 %v875
    %1057 = vmatprep.subr.bf16.mxu0 0
    %1058 = vmatpush1.bf16.msra.mxu0 %v876
    %1059 = vmatprep.subr.bf16.mxu0 0
    %1060 = vmatpush1.bf16.msra.mxu0 %v877
    %1061 = vmatprep.subr.bf16.mxu0 0
    %1062 = vmatpush1.bf16.msra.mxu0 %v878
    %1063 = vmatprep.subr.bf16.mxu0 0
    %1064 = vmatpush1.bf16.msra.mxu0 %v879
    %1065 = vmatprep.subr.bf16.mxu0 0
    %1066 = vmatpush1.bf16.msra.mxu0 %v880
    %1067 = vmatprep.subr.bf16.mxu0 0
    %1068 = vmatpush1.bf16.msra.mxu0 %v881
    %1069 = vmatprep.subr.bf16.mxu0 0
    %1070 = vmatpush1.bf16.msra.mxu0 %v882
    %1071 = vmatprep.subr.bf16.mxu0 0
    %1072 = vmatpush1.bf16.msra.mxu0 %v883
    %1073 = vmatprep.subr.bf16.mxu0 0
    %1074 = vmatpush1.bf16.msra.mxu0 %v884
    %1075 = vmatprep.subr.bf16.mxu0 0
    %1076 = vmatpush1.bf16.msra.mxu0 %v885
    %1077 = vmatprep.subr.bf16.mxu0 0
    %1078 = vmatpush1.bf16.msra.mxu0 %v886
    %1079 = vmatprep.mubr.bf16.mxu0 %v445
    %1080 = vmatmul.mubr.bf16.gmra.mrb[0].mxu0 %v444
    %v1081 = vpop.f32.mrb[0].mxu0
    %v1082 = vadd.f32 %v1042, %v1081
    %v1083 = vpop.f32.mrb[0].mxu0
    %v1084 = vpop.f32.mrb[0].mxu0
    %v1085 = vpop.f32.mrb[0].mxu0
    %1086 = vdwg.mxu0
    %1087 = vmatprep.subr.bf16.mxu0 0
    %1088 = vmatpush1.bf16.msra.mxu0 %v887
    %1089 = vmatprep.subr.bf16.mxu0 0
    %1090 = vmatpush1.bf16.msra.mxu0 %v888
    %1091 = vmatprep.subr.bf16.mxu0 0
    %1092 = vmatpush1.bf16.msra.mxu0 %v889
    %1093 = vmatprep.subr.bf16.mxu0 0
    %1094 = vmatpush1.bf16.msra.mxu0 %v890
    %1095 = vmatprep.subr.bf16.mxu0 0
    %1096 = vmatpush1.bf16.msra.mxu0 %v891
    %1097 = vmatprep.subr.bf16.mxu0 0
    %1098 = vmatpush1.bf16.msra.mxu0 %v892
    %1099 = vmatprep.subr.bf16.mxu0 0
    %1100 = vmatpush1.bf16.msra.mxu0 %v893
    %1101 = vmatprep.subr.bf16.mxu0 0
    %1102 = vmatpush1.bf16.msra.mxu0 %v894
    %1103 = vmatprep.subr.bf16.mxu0 0
    %1104 = vmatpush1.bf16.msra.mxu0 %v895
    %1105 = vmatprep.subr.bf16.mxu0 0
    %1106 = vmatpush1.bf16.msra.mxu0 %v896
    %1107 = vmatprep.subr.bf16.mxu0 0
    %1108 = vmatpush1.bf16.msra.mxu0 %v897
    %1109 = vmatprep.subr.bf16.mxu0 0
    %1110 = vmatpush1.bf16.msra.mxu0 %v898
    %1111 = vmatprep.subr.bf16.mxu0 0
    %1112 = vmatpush1.bf16.msra.mxu0 %v899
    %1113 = vmatprep.subr.bf16.mxu0 0
    %1114 = vmatpush1.bf16.msra.mxu0 %v900
    %1115 = vmatprep.subr.bf16.mxu0 0
    %1116 = vmatpush1.bf16.msra.mxu0 %v901
    %1117 = vmatprep.subr.bf16.mxu0 0
    %1118 = vmatpush1.bf16.msra.mxu0 %v902
    %1119 = vmatprep.mubr.bf16.mxu0 %v447
    %1120 = vmatmul.mubr.bf16.gmra.mrb[0].mxu0 %v446
    %v1121 = vpop.f32.mrb[0].mxu0
    %v1122 = vadd.f32 %v1082, %v1121
    %v1123 = vpop.f32.mrb[0].mxu0
    %v1124 = vpop.f32.mrb[0].mxu0
    %v1125 = vpop.f32.mrb[0].mxu0
    %1126 = vdwg.mxu0
    %v1127 = vmax.f32 %v1122, 0.0
    %v1128 = vpack.c.bf16 %v1127, %v1127
    %v1129 = vld [vmem:[#allocation9] sm:$0xff]
    %v1130 = vld [vmem:[#allocation9 + $0x8] sm:$0xff]
    %v1131 = vld [vmem:[#allocation9 + $0x10] sm:$0xff]
    %v1132 = vld [vmem:[#allocation9 + $0x18] sm:$0xff]
    %v1133 = vld [vmem:[#allocation9 + $0x20] sm:$0xff]
    %v1134 = vld [vmem:[#allocation9 + $0x28] sm:$0xff]
    %v1135 = vld [vmem:[#allocation9 + $0x30] sm:$0xff]
    %v1136 = vld [vmem:[#allocation9 + $0x38] sm:$0xff]
    %v1137 = vld [vmem:[#allocation9 + $0x40] sm:$0xff]
    %v1138 = vld [vmem:[#allocation9 + $0x48] sm:$0xff]
    %v1139 = vld [vmem:[#allocation9 + $0x50] sm:$0xff]
    %v1140 = vld [vmem:[#allocation9 + $0x58] sm:$0xff]
    %v1141 = vld [vmem:[#allocation9 + $0x60] sm:$0xff]
    %v1142 = vld [vmem:[#allocation9 + $0x68] sm:$0xff]
    %v1143 = vld [vmem:[#allocation9 + $0x70] sm:$0xff]
    %v1144 = vld [vmem:[#allocation9 + $0x78] sm:$0xff]
    %v1145 = vld [vmem:[#allocation9 + $0x80] sm:$0xff]
    %v1146 = vld [vmem:[#allocation9 + $0x88] sm:$0xff]
    %v1147 = vld [vmem:[#allocation9 + $0x90] sm:$0xff]
    %v1148 = vld [vmem:[#allocation9 + $0x98] sm:$0xff]
    %v1149 = vld [vmem:[#allocation9 + $0xa0] sm:$0xff]
    %v1150 = vld [vmem:[#allocation9 + $0xa8] sm:$0xff]
    %v1151 = vld [vmem:[#allocation9 + $0xb0] sm:$0xff]
    %v1152 = vld [vmem:[#allocation9 + $0xb8] sm:$0xff]
    %v1153 = vld [vmem:[#allocation9 + $0xc0] sm:$0xff]
    %v1154 = vld [vmem:[#allocation9 + $0xc8] sm:$0xff]
    %v1155 = vld [vmem:[#allocation9 + $0xd0] sm:$0xff]
    %v1156 = vld [vmem:[#allocation9 + $0xd8] sm:$0xff]
    %v1157 = vld [vmem:[#allocation9 + $0xe0] sm:$0xff]
    %v1158 = vld [vmem:[#allocation9 + $0xe8] sm:$0xff]
    %v1159 = vld [vmem:[#allocation9 + $0xf0] sm:$0xff]
    %v1160 = vld [vmem:[#allocation9 + $0xf8] sm:$0xff]
    %v1161 = vld [vmem:[%s7] sm:$0xf]
    %v1163 = vlaneseq
    %v1164 = vshrl.u32 %v1163, 7
    %v1165 = vsub.s32 0, %v1164
    %v1166 = vrot.slane %v1161, %v1165
    %v1167 = vlaneseq
    %v1168 = vshrl.u32 %v1167, 7
    %v1169 = vsub.s32 1, %v1168
    %v1170 = vrot.slane %v1161, %v1169
    %v1171 = vlaneseq
    %v1172 = vshrl.u32 %v1171, 7
    %v1173 = vsub.s32 2, %v1172
    %v1174 = vrot.slane %v1161, %v1173
    %v1175 = vlaneseq
    %v1176 = vshrl.u32 %v1175, 7
    %v1177 = vsub.s32 3, %v1176
    %v1178 = vrot.slane %v1161, %v1177
    %v1215 = vunpack.c.l.b16 %v1129
    %v1216 = vunpack.c.h.b16 %v1129
    %v1217 = vunpack.c.l.b16 %v1130
    %v1218 = vunpack.c.h.b16 %v1130
    %v1219 = vunpack.c.l.b16 %v1131
    %v1220 = vunpack.c.h.b16 %v1131
    %v1221 = vunpack.c.l.b16 %v1132
    %v1222 = vunpack.c.h.b16 %v1132
    %v1223 = vunpack.c.l.b16 %v1133
    %v1224 = vunpack.c.h.b16 %v1133
    %v1225 = vunpack.c.l.b16 %v1134
    %v1226 = vunpack.c.h.b16 %v1134
    %v1227 = vunpack.c.l.b16 %v1135
    %v1228 = vunpack.c.h.b16 %v1135
    %v1229 = vunpack.c.l.b16 %v1136
    %v1230 = vunpack.c.h.b16 %v1136
    %v1231 = vunpack.c.l.b16 %v1137
    %v1232 = vunpack.c.h.b16 %v1137
    %v1233 = vunpack.c.l.b16 %v1138
    %v1234 = vunpack.c.h.b16 %v1138
    %v1235 = vunpack.c.l.b16 %v1139
    %v1236 = vunpack.c.h.b16 %v1139
    %v1237 = vunpack.c.l.b16 %v1140
    %v1238 = vunpack.c.h.b16 %v1140
    %v1239 = vunpack.c.l.b16 %v1141
    %v1240 = vunpack.c.h.b16 %v1141
    %v1241 = vunpack.c.l.b16 %v1142
    %v1242 = vunpack.c.h.b16 %v1142
    %v1243 = vunpack.c.l.b16 %v1143
    %v1244 = vunpack.c.h.b16 %v1143
    %v1245 = vunpack.c.l.b16 %v1144
    %v1246 = vunpack.c.h.b16 %v1144
    %v1247 = vunpack.c.l.b16 %v1145
    %v1248 = vunpack.c.h.b16 %v1145
    %v1249 = vunpack.c.l.b16 %v1146
    %v1250 = vunpack.c.h.b16 %v1146
    %v1251 = vunpack.c.l.b16 %v1147
    %v1252 = vunpack.c.h.b16 %v1147
    %v1253 = vunpack.c.l.b16 %v1148
    %v1254 = vunpack.c.h.b16 %v1148
    %v1255 = vunpack.c.l.b16 %v1149
    %v1256 = vunpack.c.h.b16 %v1149
    %v1257 = vunpack.c.l.b16 %v1150
    %v1258 = vunpack.c.h.b16 %v1150
    %v1259 = vunpack.c.l.b16 %v1151
    %v1260 = vunpack.c.h.b16 %v1151
    %v1261 = vunpack.c.l.b16 %v1152
    %v1262 = vunpack.c.h.b16 %v1152
    %v1263 = vunpack.c.l.b16 %v1153
    %v1264 = vunpack.c.h.b16 %v1153
    %v1265 = vunpack.c.l.b16 %v1154
    %v1266 = vunpack.c.h.b16 %v1154
    %v1267 = vunpack.c.l.b16 %v1155
    %v1268 = vunpack.c.h.b16 %v1155
    %v1269 = vunpack.c.l.b16 %v1156
    %v1270 = vunpack.c.h.b16 %v1156
    %v1271 = vunpack.c.l.b16 %v1157
    %v1272 = vunpack.c.h.b16 %v1157
    %v1273 = vunpack.c.l.b16 %v1158
    %v1274 = vunpack.c.h.b16 %v1158
    %v1275 = vunpack.c.l.b16 %v1159
    %v1276 = vunpack.c.h.b16 %v1159
    %v1277 = vunpack.c.l.b16 %v1160
    %v1278 = vunpack.c.h.b16 %v1160
    %v1279 = vpack.c.b16 %v1219, %v1215
    %v1280 = vpack.c.b16 %v1220, %v1216
    %v1281 = vpack.c.b16 %v1221, %v1217
    %v1282 = vpack.c.b16 %v1222, %v1218
    %v1283 = vpack.c.b16 %v1227, %v1223
    %v1284 = vpack.c.b16 %v1228, %v1224
    %v1285 = vpack.c.b16 %v1229, %v1225
    %v1286 = vpack.c.b16 %v1230, %v1226
    %v1287 = vpack.c.b16 %v1235, %v1231
    %v1288 = vpack.c.b16 %v1236, %v1232
    %v1289 = vpack.c.b16 %v1237, %v1233
    %v1290 = vpack.c.b16 %v1238, %v1234
    %v1291 = vpack.c.b16 %v1243, %v1239
    %v1292 = vpack.c.b16 %v1244, %v1240
    %v1293 = vpack.c.b16 %v1245, %v1241
    %v1294 = vpack.c.b16 %v1246, %v1242
    %v1295 = vpack.c.b16 %v1251, %v1247
    %v1296 = vpack.c.b16 %v1252, %v1248
    %v1297 = vpack.c.b16 %v1253, %v1249
    %v1298 = vpack.c.b16 %v1254, %v1250
    %v1299 = vpack.c.b16 %v1259, %v1255
    %v1300 = vpack.c.b16 %v1260, %v1256
    %v1301 = vpack.c.b16 %v1261, %v1257
    %v1302 = vpack.c.b16 %v1262, %v1258
    %v1303 = vpack.c.b16 %v1267, %v1263
    %v1304 = vpack.c.b16 %v1268, %v1264
    %v1305 = vpack.c.b16 %v1269, %v1265
    %v1306 = vpack.c.b16 %v1270, %v1266
    %v1307 = vpack.c.b16 %v1275, %v1271
    %v1308 = vpack.c.b16 %v1276, %v1272
    %v1309 = vpack.c.b16 %v1277, %v1273
    %v1310 = vpack.c.b16 %v1278, %v1274
    %1343 = vmatprep.subr.bf16.mxu0 %v1280
    %1344 = vmatpush1.bf16.msra.mxu0 %v1279
    %1345 = vmatprep.subr.bf16.mxu0 %v1284
    %1346 = vmatpush1.bf16.msra.mxu0 %v1283
    %1347 = vmatprep.subr.bf16.mxu0 %v1288
    %1348 = vmatpush1.bf16.msra.mxu0 %v1287
    %1349 = vmatprep.subr.bf16.mxu0 %v1292
    %1350 = vmatpush1.bf16.msra.mxu0 %v1291
    %1351 = vmatprep.subr.bf16.mxu0 %v1296
    %1352 = vmatpush1.bf16.msra.mxu0 %v1295
    %1353 = vmatprep.subr.bf16.mxu0 %v1300
    %1354 = vmatpush1.bf16.msra.mxu0 %v1299
    %1355 = vmatprep.subr.bf16.mxu0 %v1304
    %1356 = vmatpush1.bf16.msra.mxu0 %v1303
    %1357 = vmatprep.subr.bf16.mxu0 %v1308
    %1358 = vmatpush1.bf16.msra.mxu0 %v1307
    %1359 = vmatprep.subr.bf16.mxu0 0
    %1360 = vmatpush1.bf16.msra.mxu0 0
    %1361 = vmatprep.subr.bf16.mxu0 0
    %1362 = vmatpush1.bf16.msra.mxu0 0
    %1363 = vmatprep.subr.bf16.mxu0 0
    %1364 = vmatpush1.bf16.msra.mxu0 0
    %1365 = vmatprep.subr.bf16.mxu0 0
    %1366 = vmatpush1.bf16.msra.mxu0 0
    %1367 = vmatprep.subr.bf16.mxu0 0
    %1368 = vmatpush1.bf16.msra.mxu0 0
    %1369 = vmatprep.subr.bf16.mxu0 0
    %1370 = vmatpush1.bf16.msra.mxu0 0
    %1371 = vmatprep.subr.bf16.mxu0 0
    %1372 = vmatpush1.bf16.msra.mxu0 0
    %1373 = vmatprep.subr.bf16.mxu0 0
    %1374 = vmatpush1.bf16.msra.mxu0 0
    %1375 = vmatprep.mubr.bf16.mxu0 0
    %1376 = vmatmul.mubr.bf16.gmra.mrb[0].mxu0 %v1128
    %v1377 = vpop.f32.mrb[0].mxu0
    %v1378 = vadd.f32 %v1166, %v1377
    %v1379 = vpop.f32.mrb[0].mxu0
    %v1380 = vadd.f32 %v1170, %v1379
    %v1381 = vpop.f32.mrb[0].mxu0
    %v1382 = vpop.f32.mrb[0].mxu0
    %1383 = vdwg.mxu0
    %1384 = vmatprep.subr.bf16.mxu0 %v1282
    %1385 = vmatpush1.bf16.msra.mxu0 %v1281
    %1386 = vmatprep.subr.bf16.mxu0 %v1286
    %1387 = vmatpush1.bf16.msra.mxu0 %v1285
    %1388 = vmatprep.subr.bf16.mxu0 %v1290
    %1389 = vmatpush1.bf16.msra.mxu0 %v1289
    %1390 = vmatprep.subr.bf16.mxu0 %v1294
    %1391 = vmatpush1.bf16.msra.mxu0 %v1293
    %1392 = vmatprep.subr.bf16.mxu0 %v1298
    %1393 = vmatpush1.bf16.msra.mxu0 %v1297
    %1394 = vmatprep.subr.bf16.mxu0 %v1302
    %1395 = vmatpush1.bf16.msra.mxu0 %v1301
    %1396 = vmatprep.subr.bf16.mxu0 %v1306
    %1397 = vmatpush1.bf16.msra.mxu0 %v1305
    %1398 = vmatprep.subr.bf16.mxu0 %v1310
    %1399 = vmatpush1.bf16.msra.mxu0 %v1309
    %1400 = vmatprep.subr.bf16.mxu0 0
    %1401 = vmatpush1.bf16.msra.mxu0 0
    %1402 = vmatprep.subr.bf16.mxu0 0
    %1403 = vmatpush1.bf16.msra.mxu0 0
    %1404 = vmatprep.subr.bf16.mxu0 0
    %1405 = vmatpush1.bf16.msra.mxu0 0
    %1406 = vmatprep.subr.bf16.mxu0 0
    %1407 = vmatpush1.bf16.msra.mxu0 0
    %1408 = vmatprep.subr.bf16.mxu0 0
    %1409 = vmatpush1.bf16.msra.mxu0 0
    %1410 = vmatprep.subr.bf16.mxu0 0
    %1411 = vmatpush1.bf16.msra.mxu0 0
    %1412 = vmatprep.subr.bf16.mxu0 0
    %1413 = vmatpush1.bf16.msra.mxu0 0
    %1414 = vmatprep.subr.bf16.mxu0 0
    %1415 = vmatpush1.bf16.msra.mxu0 0
    %1416 = vmatprep.mubr.bf16.mxu0 0
    %1417 = vmatmul.mubr.bf16.gmra.mrb[0].mxu0 %v1128
    %v1418 = vpop.f32.mrb[0].mxu0
    %v1419 = vadd.f32 %v1174, %v1418
    %v1420 = vpop.f32.mrb[0].mxu0
    %v1421 = vadd.f32 %v1178, %v1420
    %v1422 = vpop.f32.mrb[0].mxu0
    %v1423 = vpop.f32.mrb[0].mxu0
    %1424 = vdwg.mxu0
    %v1425 = vmax.f32 %v1378, 0.0
    %v1426 = vmax.f32 %v1380, 0.0
    %v1427 = vmax.f32 %v1419, 0.0
    %v1428 = vmax.f32 %v1421, 0.0
    %v1429 = vpack.c.bf16 %v1425, %v1425
    %v1430 = vpack.c.bf16 %v1426, %v1426
    %v1431 = vpack.c.bf16 %v1427, %v1427
    %v1432 = vpack.c.bf16 %v1428, %v1428
    %v1433 = vld [vmem:[#allocation11] sm:$0xff]
    %v1434 = vld [vmem:[#allocation11 + $0x8] sm:$0xff]
    %v1435 = vld [vmem:[#allocation11 + $0x10] sm:$0xff]
    %v1436 = vld [vmem:[#allocation11 + $0x18] sm:$0xff]
    %v1437 = vld [vmem:[#allocation11 + $0x20] sm:$0xff]
    %v1438 = vld [vmem:[#allocation11 + $0x28] sm:$0xff]
    %v1439 = vld [vmem:[#allocation11 + $0x30] sm:$0xff]
    %v1440 = vld [vmem:[#allocation11 + $0x38] sm:$0xff]
    %v1441 = vld [vmem:[#allocation11 + $0x40] sm:$0xff]
    %v1442 = vld [vmem:[#allocation11 + $0x48] sm:$0xff]
    %v1443 = vld [vmem:[#allocation11 + $0x50] sm:$0xff]
    %v1444 = vld [vmem:[#allocation11 + $0x58] sm:$0xff]
    %v1445 = vld [vmem:[#allocation11 + $0x60] sm:$0xff]
    %v1446 = vld [vmem:[#allocation11 + $0x68] sm:$0xff]
    %v1447 = vld [vmem:[#allocation11 + $0x70] sm:$0xff]
    %v1448 = vld [vmem:[#allocation11 + $0x78] sm:$0xff]
    %v1449 = vld [vmem:[#allocation11 + $0x80] sm:$0xff]
    %v1450 = vld [vmem:[#allocation11 + $0x88] sm:$0xff]
    %v1451 = vld [vmem:[#allocation11 + $0x90] sm:$0xff]
    %v1452 = vld [vmem:[#allocation11 + $0x98] sm:$0xff]
    %v1453 = vld [vmem:[#allocation11 + $0xa0] sm:$0xff]
    %v1454 = vld [vmem:[#allocation11 + $0xa8] sm:$0xff]
    %v1455 = vld [vmem:[#allocation11 + $0xb0] sm:$0xff]
    %v1456 = vld [vmem:[#allocation11 + $0xb8] sm:$0xff]
    %v1457 = vld [vmem:[#allocation11 + $0xc0] sm:$0xff]
    %v1458 = vld [vmem:[#allocation11 + $0xc8] sm:$0xff]
    %v1459 = vld [vmem:[#allocation11 + $0xd0] sm:$0xff]
    %v1460 = vld [vmem:[#allocation11 + $0xd8] sm:$0xff]
    %v1461 = vld [vmem:[#allocation11 + $0xe0] sm:$0xff]
    %v1462 = vld [vmem:[#allocation11 + $0xe8] sm:$0xff]
    %v1463 = vld [vmem:[#allocation11 + $0xf0] sm:$0xff]
    %v1464 = vld [vmem:[#allocation11 + $0xf8] sm:$0xff]
    %v1465 = vld [vmem:[#allocation11 + $0x100] sm:$0xff]
    %v1466 = vld [vmem:[#allocation11 + $0x108] sm:$0xff]
    %v1467 = vld [vmem:[#allocation11 + $0x110] sm:$0xff]
    %v1468 = vld [vmem:[#allocation11 + $0x118] sm:$0xff]
    %v1469 = vld [vmem:[#allocation11 + $0x120] sm:$0xff]
    %v1470 = vld [vmem:[#allocation11 + $0x128] sm:$0xff]
    %v1471 = vld [vmem:[#allocation11 + $0x130] sm:$0xff]
    %v1472 = vld [vmem:[#allocation11 + $0x138] sm:$0xff]
    %v1473 = vld [vmem:[#allocation11 + $0x140] sm:$0xff]
    %v1474 = vld [vmem:[#allocation11 + $0x148] sm:$0xff]
    %v1475 = vld [vmem:[#allocation11 + $0x150] sm:$0xff]
    %v1476 = vld [vmem:[#allocation11 + $0x158] sm:$0xff]
    %v1477 = vld [vmem:[#allocation11 + $0x160] sm:$0xff]
    %v1478 = vld [vmem:[#allocation11 + $0x168] sm:$0xff]
    %v1479 = vld [vmem:[#allocation11 + $0x170] sm:$0xff]
    %v1480 = vld [vmem:[#allocation11 + $0x178] sm:$0xff]
    %v1481 = vld [vmem:[#allocation11 + $0x180] sm:$0xff]
    %v1482 = vld [vmem:[#allocation11 + $0x188] sm:$0xff]
    %v1483 = vld [vmem:[#allocation11 + $0x190] sm:$0xff]
    %v1484 = vld [vmem:[#allocation11 + $0x198] sm:$0xff]
    %v1485 = vld [vmem:[#allocation11 + $0x1a0] sm:$0xff]
    %v1486 = vld [vmem:[#allocation11 + $0x1a8] sm:$0xff]
    %v1487 = vld [vmem:[#allocation11 + $0x1b0] sm:$0xff]
    %v1488 = vld [vmem:[#allocation11 + $0x1b8] sm:$0xff]
    %v1489 = vld [vmem:[#allocation11 + $0x1c0] sm:$0xff]
    %v1490 = vld [vmem:[#allocation11 + $0x1c8] sm:$0xff]
    %v1491 = vld [vmem:[#allocation11 + $0x1d0] sm:$0xff]
    %v1492 = vld [vmem:[#allocation11 + $0x1d8] sm:$0xff]
    %v1493 = vld [vmem:[#allocation11 + $0x1e0] sm:$0xff]
    %v1494 = vld [vmem:[#allocation11 + $0x1e8] sm:$0xff]
    %v1495 = vld [vmem:[#allocation11 + $0x1f0] sm:$0xff]
    %v1496 = vld [vmem:[#allocation11 + $0x1f8] sm:$0xff]
    %v1497 = vld [vmem:[#allocation11 + $0x200] sm:$0xff]
    %v1498 = vld [vmem:[#allocation11 + $0x208] sm:$0xff]
    %v1499 = vld [vmem:[#allocation11 + $0x210] sm:$0xff]
    %v1500 = vld [vmem:[#allocation11 + $0x218] sm:$0xff]
    %v1501 = vld [vmem:[#allocation11 + $0x220] sm:$0xff]
    %v1502 = vld [vmem:[#allocation11 + $0x228] sm:$0xff]
    %v1503 = vld [vmem:[#allocation11 + $0x230] sm:$0xff]
    %v1504 = vld [vmem:[#allocation11 + $0x238] sm:$0xff]
    %v1505 = vld [vmem:[#allocation11 + $0x240] sm:$0xff]
    %v1506 = vld [vmem:[#allocation11 + $0x248] sm:$0xff]
    %v1507 = vld [vmem:[#allocation11 + $0x250] sm:$0xff]
    %v1508 = vld [vmem:[#allocation11 + $0x258] sm:$0xff]
    %v1509 = vld [vmem:[#allocation11 + $0x260] sm:$0xff]
    %v1510 = vld [vmem:[#allocation11 + $0x268] sm:$0xff]
    %v1511 = vld [vmem:[#allocation11 + $0x270] sm:$0xff]
    %v1512 = vld [vmem:[#allocation11 + $0x278] sm:$0xff]
    %v1513 = vld [vmem:[#allocation11 + $0x280] sm:$0xff]
    %v1514 = vld [vmem:[#allocation11 + $0x288] sm:$0xff]
    %v1515 = vld [vmem:[#allocation11 + $0x290] sm:$0xff]
    %v1516 = vld [vmem:[#allocation11 + $0x298] sm:$0xff]
    %v1517 = vld [vmem:[#allocation11 + $0x2a0] sm:$0xff]
    %v1518 = vld [vmem:[#allocation11 + $0x2a8] sm:$0xff]
    %v1519 = vld [vmem:[#allocation11 + $0x2b0] sm:$0xff]
    %v1520 = vld [vmem:[#allocation11 + $0x2b8] sm:$0xff]
    %v1521 = vld [vmem:[#allocation11 + $0x2c0] sm:$0xff]
    %v1522 = vld [vmem:[#allocation11 + $0x2c8] sm:$0xff]
    %v1523 = vld [vmem:[#allocation11 + $0x2d0] sm:$0xff]
    %v1524 = vld [vmem:[#allocation11 + $0x2d8] sm:$0xff]
    %v1525 = vld [vmem:[#allocation11 + $0x2e0] sm:$0xff]
    %v1526 = vld [vmem:[#allocation11 + $0x2e8] sm:$0xff]
    %v1527 = vld [vmem:[#allocation11 + $0x2f0] sm:$0xff]
    %v1528 = vld [vmem:[#allocation11 + $0x2f8] sm:$0xff]
    %v1529 = vld [vmem:[#allocation11 + $0x300] sm:$0xff]
    %v1530 = vld [vmem:[#allocation11 + $0x308] sm:$0xff]
    %v1531 = vld [vmem:[#allocation11 + $0x310] sm:$0xff]
    %v1532 = vld [vmem:[#allocation11 + $0x318] sm:$0xff]
    %v1533 = vld [vmem:[#allocation11 + $0x320] sm:$0xff]
    %v1534 = vld [vmem:[#allocation11 + $0x328] sm:$0xff]
    %v1535 = vld [vmem:[#allocation11 + $0x330] sm:$0xff]
    %v1536 = vld [vmem:[#allocation11 + $0x338] sm:$0xff]
    %v1537 = vld [vmem:[#allocation11 + $0x340] sm:$0xff]
    %v1538 = vld [vmem:[#allocation11 + $0x348] sm:$0xff]
    %v1539 = vld [vmem:[#allocation11 + $0x350] sm:$0xff]
    %v1540 = vld [vmem:[#allocation11 + $0x358] sm:$0xff]
    %v1541 = vld [vmem:[#allocation11 + $0x360] sm:$0xff]
    %v1542 = vld [vmem:[#allocation11 + $0x368] sm:$0xff]
    %v1543 = vld [vmem:[#allocation11 + $0x370] sm:$0xff]
    %v1544 = vld [vmem:[#allocation11 + $0x378] sm:$0xff]
    %v1545 = vld [vmem:[#allocation11 + $0x380] sm:$0xff]
    %v1546 = vld [vmem:[#allocation11 + $0x388] sm:$0xff]
    %v1547 = vld [vmem:[#allocation11 + $0x390] sm:$0xff]
    %v1548 = vld [vmem:[#allocation11 + $0x398] sm:$0xff]
    %v1549 = vld [vmem:[#allocation11 + $0x3a0] sm:$0xff]
    %v1550 = vld [vmem:[#allocation11 + $0x3a8] sm:$0xff]
    %v1551 = vld [vmem:[#allocation11 + $0x3b0] sm:$0xff]
    %v1552 = vld [vmem:[#allocation11 + $0x3b8] sm:$0xff]
    %v1553 = vld [vmem:[#allocation11 + $0x3c0] sm:$0xff]
    %v1554 = vld [vmem:[#allocation11 + $0x3c8] sm:$0xff]
    %v1555 = vld [vmem:[#allocation11 + $0x3d0] sm:$0xff]
    %v1556 = vld [vmem:[#allocation11 + $0x3d8] sm:$0xff]
    %v1557 = vld [vmem:[#allocation11 + $0x3e0] sm:$0xff]
    %v1558 = vld [vmem:[#allocation11 + $0x3e8] sm:$0xff]
    %v1559 = vld [vmem:[#allocation11 + $0x3f0] sm:$0xff]
    %v1560 = vld [vmem:[#allocation11 + $0x3f8] sm:$0xff]
    %v1561 = vld [vmem:[%s9] sm:$0xf]
    %v1563 = vlaneseq
    %v1564 = vshrl.u32 %v1563, 7
    %v1565 = vsub.s32 0, %v1564
    %v1566 = vrot.slane %v1561, %v1565
    %v1567 = vlaneseq
    %v1568 = vshrl.u32 %v1567, 7
    %v1569 = vsub.s32 1, %v1568
    %v1570 = vrot.slane %v1561, %v1569
    %v1571 = vlaneseq
    %v1572 = vshrl.u32 %v1571, 7
    %v1573 = vsub.s32 2, %v1572
    %v1574 = vrot.slane %v1561, %v1573
    %v1575 = vlaneseq
    %v1576 = vshrl.u32 %v1575, 7
    %v1577 = vsub.s32 3, %v1576
    %v1578 = vrot.slane %v1561, %v1577
    %v1711 = vunpack.c.l.b16 %v1433
    %v1712 = vunpack.c.h.b16 %v1433
    %v1713 = vunpack.c.l.b16 %v1434
    %v1714 = vunpack.c.h.b16 %v1434
    %v1715 = vunpack.c.l.b16 %v1435
    %v1716 = vunpack.c.h.b16 %v1435
    %v1717 = vunpack.c.l.b16 %v1436
    %v1718 = vunpack.c.h.b16 %v1436
    %v1719 = vunpack.c.l.b16 %v1437
    %v1720 = vunpack.c.h.b16 %v1437
    %v1721 = vunpack.c.l.b16 %v1438
    %v1722 = vunpack.c.h.b16 %v1438
    %v1723 = vunpack.c.l.b16 %v1439
    %v1724 = vunpack.c.h.b16 %v1439
    %v1725 = vunpack.c.l.b16 %v1440
    %v1726 = vunpack.c.h.b16 %v1440
    %v1727 = vunpack.c.l.b16 %v1441
    %v1728 = vunpack.c.h.b16 %v1441
    %v1729 = vunpack.c.l.b16 %v1442
    %v1730 = vunpack.c.h.b16 %v1442
    %v1731 = vunpack.c.l.b16 %v1443
    %v1732 = vunpack.c.h.b16 %v1443
    %v1733 = vunpack.c.l.b16 %v1444
    %v1734 = vunpack.c.h.b16 %v1444
    %v1735 = vunpack.c.l.b16 %v1445
    %v1736 = vunpack.c.h.b16 %v1445
    %v1737 = vunpack.c.l.b16 %v1446
    %v1738 = vunpack.c.h.b16 %v1446
    %v1739 = vunpack.c.l.b16 %v1447
    %v1740 = vunpack.c.h.b16 %v1447
    %v1741 = vunpack.c.l.b16 %v1448
    %v1742 = vunpack.c.h.b16 %v1448
    %v1743 = vunpack.c.l.b16 %v1449
    %v1744 = vunpack.c.h.b16 %v1449
    %v1745 = vunpack.c.l.b16 %v1450
    %v1746 = vunpack.c.h.b16 %v1450
    %v1747 = vunpack.c.l.b16 %v1451
    %v1748 = vunpack.c.h.b16 %v1451
    %v1749 = vunpack.c.l.b16 %v1452
    %v1750 = vunpack.c.h.b16 %v1452
    %v1751 = vunpack.c.l.b16 %v1453
    %v1752 = vunpack.c.h.b16 %v1453
    %v1753 = vunpack.c.l.b16 %v1454
    %v1754 = vunpack.c.h.b16 %v1454
    %v1755 = vunpack.c.l.b16 %v1455
    %v1756 = vunpack.c.h.b16 %v1455
    %v1757 = vunpack.c.l.b16 %v1456
    %v1758 = vunpack.c.h.b16 %v1456
    %v1759 = vunpack.c.l.b16 %v1457
    %v1760 = vunpack.c.h.b16 %v1457
    %v1761 = vunpack.c.l.b16 %v1458
    %v1762 = vunpack.c.h.b16 %v1458
    %v1763 = vunpack.c.l.b16 %v1459
    %v1764 = vunpack.c.h.b16 %v1459
    %v1765 = vunpack.c.l.b16 %v1460
    %v1766 = vunpack.c.h.b16 %v1460
    %v1767 = vunpack.c.l.b16 %v1461
    %v1768 = vunpack.c.h.b16 %v1461
    %v1769 = vunpack.c.l.b16 %v1462
    %v1770 = vunpack.c.h.b16 %v1462
    %v1771 = vunpack.c.l.b16 %v1463
    %v1772 = vunpack.c.h.b16 %v1463
    %v1773 = vunpack.c.l.b16 %v1464
    %v1774 = vunpack.c.h.b16 %v1464
    %v1775 = vunpack.c.l.b16 %v1465
    %v1776 = vunpack.c.h.b16 %v1465
    %v1777 = vunpack.c.l.b16 %v1466
    %v1778 = vunpack.c.h.b16 %v1466
    %v1779 = vunpack.c.l.b16 %v1467
    %v1780 = vunpack.c.h.b16 %v1467
    %v1781 = vunpack.c.l.b16 %v1468
    %v1782 = vunpack.c.h.b16 %v1468
    %v1783 = vunpack.c.l.b16 %v1469
    %v1784 = vunpack.c.h.b16 %v1469
    %v1785 = vunpack.c.l.b16 %v1470
    %v1786 = vunpack.c.h.b16 %v1470
    %v1787 = vunpack.c.l.b16 %v1471
    %v1788 = vunpack.c.h.b16 %v1471
    %v1789 = vunpack.c.l.b16 %v1472
    %v1790 = vunpack.c.h.b16 %v1472
    %v1791 = vunpack.c.l.b16 %v1473
    %v1792 = vunpack.c.h.b16 %v1473
    %v1793 = vunpack.c.l.b16 %v1474
    %v1794 = vunpack.c.h.b16 %v1474
    %v1795 = vunpack.c.l.b16 %v1475
    %v1796 = vunpack.c.h.b16 %v1475
    %v1797 = vunpack.c.l.b16 %v1476
    %v1798 = vunpack.c.h.b16 %v1476
    %v1799 = vunpack.c.l.b16 %v1477
    %v1800 = vunpack.c.h.b16 %v1477
    %v1801 = vunpack.c.l.b16 %v1478
    %v1802 = vunpack.c.h.b16 %v1478
    %v1803 = vunpack.c.l.b16 %v1479
    %v1804 = vunpack.c.h.b16 %v1479
    %v1805 = vunpack.c.l.b16 %v1480
    %v1806 = vunpack.c.h.b16 %v1480
    %v1807 = vunpack.c.l.b16 %v1481
    %v1808 = vunpack.c.h.b16 %v1481
    %v1809 = vunpack.c.l.b16 %v1482
    %v1810 = vunpack.c.h.b16 %v1482
    %v1811 = vunpack.c.l.b16 %v1483
    %v1812 = vunpack.c.h.b16 %v1483
    %v1813 = vunpack.c.l.b16 %v1484
    %v1814 = vunpack.c.h.b16 %v1484
    %v1815 = vunpack.c.l.b16 %v1485
    %v1816 = vunpack.c.h.b16 %v1485
    %v1817 = vunpack.c.l.b16 %v1486
    %v1818 = vunpack.c.h.b16 %v1486
    %v1819 = vunpack.c.l.b16 %v1487
    %v1820 = vunpack.c.h.b16 %v1487
    %v1821 = vunpack.c.l.b16 %v1488
    %v1822 = vunpack.c.h.b16 %v1488
    %v1823 = vunpack.c.l.b16 %v1489
    %v1824 = vunpack.c.h.b16 %v1489
    %v1825 = vunpack.c.l.b16 %v1490
    %v1826 = vunpack.c.h.b16 %v1490
    %v1827 = vunpack.c.l.b16 %v1491
    %v1828 = vunpack.c.h.b16 %v1491
    %v1829 = vunpack.c.l.b16 %v1492
    %v1830 = vunpack.c.h.b16 %v1492
    %v1831 = vunpack.c.l.b16 %v1493
    %v1832 = vunpack.c.h.b16 %v1493
    %v1833 = vunpack.c.l.b16 %v1494
    %v1834 = vunpack.c.h.b16 %v1494
    %v1835 = vunpack.c.l.b16 %v1495
    %v1836 = vunpack.c.h.b16 %v1495
    %v1837 = vunpack.c.l.b16 %v1496
    %v1838 = vunpack.c.h.b16 %v1496
    %v1839 = vunpack.c.l.b16 %v1497
    %v1840 = vunpack.c.h.b16 %v1497
    %v1841 = vunpack.c.l.b16 %v1498
    %v1842 = vunpack.c.h.b16 %v1498
    %v1843 = vunpack.c.l.b16 %v1499
    %v1844 = vunpack.c.h.b16 %v1499
    %v1845 = vunpack.c.l.b16 %v1500
    %v1846 = vunpack.c.h.b16 %v1500
    %v1847 = vunpack.c.l.b16 %v1501
    %v1848 = vunpack.c.h.b16 %v1501
    %v1849 = vunpack.c.l.b16 %v1502
    %v1850 = vunpack.c.h.b16 %v1502
    %v1851 = vunpack.c.l.b16 %v1503
    %v1852 = vunpack.c.h.b16 %v1503
    %v1853 = vunpack.c.l.b16 %v1504
    %v1854 = vunpack.c.h.b16 %v1504
    %v1855 = vunpack.c.l.b16 %v1505
    %v1856 = vunpack.c.h.b16 %v1505
    %v1857 = vunpack.c.l.b16 %v1506
    %v1858 = vunpack.c.h.b16 %v1506
    %v1859 = vunpack.c.l.b16 %v1507
    %v1860 = vunpack.c.h.b16 %v1507
    %v1861 = vunpack.c.l.b16 %v1508
    %v1862 = vunpack.c.h.b16 %v1508
    %v1863 = vunpack.c.l.b16 %v1509
    %v1864 = vunpack.c.h.b16 %v1509
    %v1865 = vunpack.c.l.b16 %v1510
    %v1866 = vunpack.c.h.b16 %v1510
    %v1867 = vunpack.c.l.b16 %v1511
    %v1868 = vunpack.c.h.b16 %v1511
    %v1869 = vunpack.c.l.b16 %v1512
    %v1870 = vunpack.c.h.b16 %v1512
    %v1871 = vunpack.c.l.b16 %v1513
    %v1872 = vunpack.c.h.b16 %v1513
    %v1873 = vunpack.c.l.b16 %v1514
    %v1874 = vunpack.c.h.b16 %v1514
    %v1875 = vunpack.c.l.b16 %v1515
    %v1876 = vunpack.c.h.b16 %v1515
    %v1877 = vunpack.c.l.b16 %v1516
    %v1878 = vunpack.c.h.b16 %v1516
    %v1879 = vunpack.c.l.b16 %v1517
    %v1880 = vunpack.c.h.b16 %v1517
    %v1881 = vunpack.c.l.b16 %v1518
    %v1882 = vunpack.c.h.b16 %v1518
    %v1883 = vunpack.c.l.b16 %v1519
    %v1884 = vunpack.c.h.b16 %v1519
    %v1885 = vunpack.c.l.b16 %v1520
    %v1886 = vunpack.c.h.b16 %v1520
    %v1887 = vunpack.c.l.b16 %v1521
    %v1888 = vunpack.c.h.b16 %v1521
    %v1889 = vunpack.c.l.b16 %v1522
    %v1890 = vunpack.c.h.b16 %v1522
    %v1891 = vunpack.c.l.b16 %v1523
    %v1892 = vunpack.c.h.b16 %v1523
    %v1893 = vunpack.c.l.b16 %v1524
    %v1894 = vunpack.c.h.b16 %v1524
    %v1895 = vunpack.c.l.b16 %v1525
    %v1896 = vunpack.c.h.b16 %v1525
    %v1897 = vunpack.c.l.b16 %v1526
    %v1898 = vunpack.c.h.b16 %v1526
    %v1899 = vunpack.c.l.b16 %v1527
    %v1900 = vunpack.c.h.b16 %v1527
    %v1901 = vunpack.c.l.b16 %v1528
    %v1902 = vunpack.c.h.b16 %v1528
    %v1903 = vunpack.c.l.b16 %v1529
    %v1904 = vunpack.c.h.b16 %v1529
    %v1905 = vunpack.c.l.b16 %v1530
    %v1906 = vunpack.c.h.b16 %v1530
    %v1907 = vunpack.c.l.b16 %v1531
    %v1908 = vunpack.c.h.b16 %v1531
    %v1909 = vunpack.c.l.b16 %v1532
    %v1910 = vunpack.c.h.b16 %v1532
    %v1911 = vunpack.c.l.b16 %v1533
    %v1912 = vunpack.c.h.b16 %v1533
    %v1913 = vunpack.c.l.b16 %v1534
    %v1914 = vunpack.c.h.b16 %v1534
    %v1915 = vunpack.c.l.b16 %v1535
    %v1916 = vunpack.c.h.b16 %v1535
    %v1917 = vunpack.c.l.b16 %v1536
    %v1918 = vunpack.c.h.b16 %v1536
    %v1919 = vunpack.c.l.b16 %v1537
    %v1920 = vunpack.c.h.b16 %v1537
    %v1921 = vunpack.c.l.b16 %v1538
    %v1922 = vunpack.c.h.b16 %v1538
    %v1923 = vunpack.c.l.b16 %v1539
    %v1924 = vunpack.c.h.b16 %v1539
    %v1925 = vunpack.c.l.b16 %v1540
    %v1926 = vunpack.c.h.b16 %v1540
    %v1927 = vunpack.c.l.b16 %v1541
    %v1928 = vunpack.c.h.b16 %v1541
    %v1929 = vunpack.c.l.b16 %v1542
    %v1930 = vunpack.c.h.b16 %v1542
    %v1931 = vunpack.c.l.b16 %v1543
    %v1932 = vunpack.c.h.b16 %v1543
    %v1933 = vunpack.c.l.b16 %v1544
    %v1934 = vunpack.c.h.b16 %v1544
    %v1935 = vunpack.c.l.b16 %v1545
    %v1936 = vunpack.c.h.b16 %v1545
    %v1937 = vunpack.c.l.b16 %v1546
    %v1938 = vunpack.c.h.b16 %v1546
    %v1939 = vunpack.c.l.b16 %v1547
    %v1940 = vunpack.c.h.b16 %v1547
    %v1941 = vunpack.c.l.b16 %v1548
    %v1942 = vunpack.c.h.b16 %v1548
    %v1943 = vunpack.c.l.b16 %v1549
    %v1944 = vunpack.c.h.b16 %v1549
    %v1945 = vunpack.c.l.b16 %v1550
    %v1946 = vunpack.c.h.b16 %v1550
    %v1947 = vunpack.c.l.b16 %v1551
    %v1948 = vunpack.c.h.b16 %v1551
    %v1949 = vunpack.c.l.b16 %v1552
    %v1950 = vunpack.c.h.b16 %v1552
    %v1951 = vunpack.c.l.b16 %v1553
    %v1952 = vunpack.c.h.b16 %v1553
    %v1953 = vunpack.c.l.b16 %v1554
    %v1954 = vunpack.c.h.b16 %v1554
    %v1955 = vunpack.c.l.b16 %v1555
    %v1956 = vunpack.c.h.b16 %v1555
    %v1957 = vunpack.c.l.b16 %v1556
    %v1958 = vunpack.c.h.b16 %v1556
    %v1959 = vunpack.c.l.b16 %v1557
    %v1960 = vunpack.c.h.b16 %v1557
    %v1961 = vunpack.c.l.b16 %v1558
    %v1962 = vunpack.c.h.b16 %v1558
    %v1963 = vunpack.c.l.b16 %v1559
    %v1964 = vunpack.c.h.b16 %v1559
    %v1965 = vunpack.c.l.b16 %v1560
    %v1966 = vunpack.c.h.b16 %v1560
    %v1967 = vpack.c.b16 %v1715, %v1711
    %v1968 = vpack.c.b16 %v1716, %v1712
    %v1969 = vpack.c.b16 %v1717, %v1713
    %v1970 = vpack.c.b16 %v1718, %v1714
    %v1971 = vpack.c.b16 %v1723, %v1719
    %v1972 = vpack.c.b16 %v1724, %v1720
    %v1973 = vpack.c.b16 %v1725, %v1721
    %v1974 = vpack.c.b16 %v1726, %v1722
    %v1975 = vpack.c.b16 %v1731, %v1727
    %v1976 = vpack.c.b16 %v1732, %v1728
    %v1977 = vpack.c.b16 %v1733, %v1729
    %v1978 = vpack.c.b16 %v1734, %v1730
    %v1979 = vpack.c.b16 %v1739, %v1735
    %v1980 = vpack.c.b16 %v1740, %v1736
    %v1981 = vpack.c.b16 %v1741, %v1737
    %v1982 = vpack.c.b16 %v1742, %v1738
    %v1983 = vpack.c.b16 %v1747, %v1743
    %v1984 = vpack.c.b16 %v1748, %v1744
    %v1985 = vpack.c.b16 %v1749, %v1745
    %v1986 = vpack.c.b16 %v1750, %v1746
    %v1987 = vpack.c.b16 %v1755, %v1751
    %v1988 = vpack.c.b16 %v1756, %v1752
    %v1989 = vpack.c.b16 %v1757, %v1753
    %v1990 = vpack.c.b16 %v1758, %v1754
    %v1991 = vpack.c.b16 %v1763, %v1759
    %v1992 = vpack.c.b16 %v1764, %v1760
    %v1993 = vpack.c.b16 %v1765, %v1761
    %v1994 = vpack.c.b16 %v1766, %v1762
    %v1995 = vpack.c.b16 %v1771, %v1767
    %v1996 = vpack.c.b16 %v1772, %v1768
    %v1997 = vpack.c.b16 %v1773, %v1769
    %v1998 = vpack.c.b16 %v1774, %v1770
    %v1999 = vpack.c.b16 %v1779, %v1775
    %v2000 = vpack.c.b16 %v1780, %v1776
    %v2001 = vpack.c.b16 %v1781, %v1777
    %v2002 = vpack.c.b16 %v1782, %v1778
    %v2003 = vpack.c.b16 %v1787, %v1783
    %v2004 = vpack.c.b16 %v1788, %v1784
    %v2005 = vpack.c.b16 %v1789, %v1785
    %v2006 = vpack.c.b16 %v1790, %v1786
    %v2007 = vpack.c.b16 %v1795, %v1791
    %v2008 = vpack.c.b16 %v1796, %v1792
    %v2009 = vpack.c.b16 %v1797, %v1793
    %v2010 = vpack.c.b16 %v1798, %v1794
    %v2011 = vpack.c.b16 %v1803, %v1799
    %v2012 = vpack.c.b16 %v1804, %v1800
    %v2013 = vpack.c.b16 %v1805, %v1801
    %v2014 = vpack.c.b16 %v1806, %v1802
    %v2015 = vpack.c.b16 %v1811, %v1807
    %v2016 = vpack.c.b16 %v1812, %v1808
    %v2017 = vpack.c.b16 %v1813, %v1809
    %v2018 = vpack.c.b16 %v1814, %v1810
    %v2019 = vpack.c.b16 %v1819, %v1815
    %v2020 = vpack.c.b16 %v1820, %v1816
    %v2021 = vpack.c.b16 %v1821, %v1817
    %v2022 = vpack.c.b16 %v1822, %v1818
    %v2023 = vpack.c.b16 %v1827, %v1823
    %v2024 = vpack.c.b16 %v1828, %v1824
    %v2025 = vpack.c.b16 %v1829, %v1825
    %v2026 = vpack.c.b16 %v1830, %v1826
    %v2027 = vpack.c.b16 %v1835, %v1831
    %v2028 = vpack.c.b16 %v1836, %v1832
    %v2029 = vpack.c.b16 %v1837, %v1833
    %v2030 = vpack.c.b16 %v1838, %v1834
    %v2031 = vpack.c.b16 %v1843, %v1839
    %v2032 = vpack.c.b16 %v1844, %v1840
    %v2033 = vpack.c.b16 %v1845, %v1841
    %v2034 = vpack.c.b16 %v1846, %v1842
    %v2035 = vpack.c.b16 %v1851, %v1847
    %v2036 = vpack.c.b16 %v1852, %v1848
    %v2037 = vpack.c.b16 %v1853, %v1849
    %v2038 = vpack.c.b16 %v1854, %v1850
    %v2039 = vpack.c.b16 %v1859, %v1855
    %v2040 = vpack.c.b16 %v1860, %v1856
    %v2041 = vpack.c.b16 %v1861, %v1857
    %v2042 = vpack.c.b16 %v1862, %v1858
    %v2043 = vpack.c.b16 %v1867, %v1863
    %v2044 = vpack.c.b16 %v1868, %v1864
    %v2045 = vpack.c.b16 %v1869, %v1865
    %v2046 = vpack.c.b16 %v1870, %v1866
    %v2047 = vpack.c.b16 %v1875, %v1871
    %v2048 = vpack.c.b16 %v1876, %v1872
    %v2049 = vpack.c.b16 %v1877, %v1873
    %v2050 = vpack.c.b16 %v1878, %v1874
    %v2051 = vpack.c.b16 %v1883, %v1879
    %v2052 = vpack.c.b16 %v1884, %v1880
    %v2053 = vpack.c.b16 %v1885, %v1881
    %v2054 = vpack.c.b16 %v1886, %v1882
    %v2055 = vpack.c.b16 %v1891, %v1887
    %v2056 = vpack.c.b16 %v1892, %v1888
    %v2057 = vpack.c.b16 %v1893, %v1889
    %v2058 = vpack.c.b16 %v1894, %v1890
    %v2059 = vpack.c.b16 %v1899, %v1895
    %v2060 = vpack.c.b16 %v1900, %v1896
    %v2061 = vpack.c.b16 %v1901, %v1897
    %v2062 = vpack.c.b16 %v1902, %v1898
    %v2063 = vpack.c.b16 %v1907, %v1903
    %v2064 = vpack.c.b16 %v1908, %v1904
    %v2065 = vpack.c.b16 %v1909, %v1905
    %v2066 = vpack.c.b16 %v1910, %v1906
    %v2067 = vpack.c.b16 %v1915, %v1911
    %v2068 = vpack.c.b16 %v1916, %v1912
    %v2069 = vpack.c.b16 %v1917, %v1913
    %v2070 = vpack.c.b16 %v1918, %v1914
    %v2071 = vpack.c.b16 %v1923, %v1919
    %v2072 = vpack.c.b16 %v1924, %v1920
    %v2073 = vpack.c.b16 %v1925, %v1921
    %v2074 = vpack.c.b16 %v1926, %v1922
    %v2075 = vpack.c.b16 %v1931, %v1927
    %v2076 = vpack.c.b16 %v1932, %v1928
    %v2077 = vpack.c.b16 %v1933, %v1929
    %v2078 = vpack.c.b16 %v1934, %v1930
    %v2079 = vpack.c.b16 %v1939, %v1935
    %v2080 = vpack.c.b16 %v1940, %v1936
    %v2081 = vpack.c.b16 %v1941, %v1937
    %v2082 = vpack.c.b16 %v1942, %v1938
    %v2083 = vpack.c.b16 %v1947, %v1943
    %v2084 = vpack.c.b16 %v1948, %v1944
    %v2085 = vpack.c.b16 %v1949, %v1945
    %v2086 = vpack.c.b16 %v1950, %v1946
    %v2087 = vpack.c.b16 %v1955, %v1951
    %v2088 = vpack.c.b16 %v1956, %v1952
    %v2089 = vpack.c.b16 %v1957, %v1953
    %v2090 = vpack.c.b16 %v1958, %v1954
    %v2091 = vpack.c.b16 %v1963, %v1959
    %v2092 = vpack.c.b16 %v1964, %v1960
    %v2093 = vpack.c.b16 %v1965, %v1961
    %v2094 = vpack.c.b16 %v1966, %v1962
    %2223 = vmatprep.subr.bf16.mxu0 %v1968
    %2224 = vmatpush1.bf16.msra.mxu0 %v1967
    %2225 = vmatprep.subr.bf16.mxu0 %v1972
    %2226 = vmatpush1.bf16.msra.mxu0 %v1971
    %2227 = vmatprep.subr.bf16.mxu0 %v1976
    %2228 = vmatpush1.bf16.msra.mxu0 %v1975
    %2229 = vmatprep.subr.bf16.mxu0 %v1980
    %2230 = vmatpush1.bf16.msra.mxu0 %v1979
    %2231 = vmatprep.subr.bf16.mxu0 %v1984
    %2232 = vmatpush1.bf16.msra.mxu0 %v1983
    %2233 = vmatprep.subr.bf16.mxu0 %v1988
    %2234 = vmatpush1.bf16.msra.mxu0 %v1987
    %2235 = vmatprep.subr.bf16.mxu0 %v1992
    %2236 = vmatpush1.bf16.msra.mxu0 %v1991
    %2237 = vmatprep.subr.bf16.mxu0 %v1996
    %2238 = vmatpush1.bf16.msra.mxu0 %v1995
    %2239 = vmatprep.subr.bf16.mxu0 %v2000
    %2240 = vmatpush1.bf16.msra.mxu0 %v1999
    %2241 = vmatprep.subr.bf16.mxu0 %v2004
    %2242 = vmatpush1.bf16.msra.mxu0 %v2003
    %2243 = vmatprep.subr.bf16.mxu0 %v2008
    %2244 = vmatpush1.bf16.msra.mxu0 %v2007
    %2245 = vmatprep.subr.bf16.mxu0 %v2012
    %2246 = vmatpush1.bf16.msra.mxu0 %v2011
    %2247 = vmatprep.subr.bf16.mxu0 %v2016
    %2248 = vmatpush1.bf16.msra.mxu0 %v2015
    %2249 = vmatprep.subr.bf16.mxu0 %v2020
    %2250 = vmatpush1.bf16.msra.mxu0 %v2019
    %2251 = vmatprep.subr.bf16.mxu0 %v2024
    %2252 = vmatpush1.bf16.msra.mxu0 %v2023
    %2253 = vmatprep.subr.bf16.mxu0 %v2028
    %2254 = vmatpush1.bf16.msra.mxu0 %v2027
    %2255 = vmatprep.mubr.bf16.mxu0 %v1430
    %2256 = vmatmul.mubr.bf16.gmra.mrb[0].mxu0 %v1429
    %v2257 = vpop.f32.mrb[0].mxu0
    %v2258 = vadd.f32 %v1566, %v2257
    %v2259 = vpop.f32.mrb[0].mxu0
    %v2260 = vadd.f32 %v1570, %v2259
    %v2261 = vpop.f32.mrb[0].mxu0
    %v2262 = vpop.f32.mrb[0].mxu0
    %2263 = vdwg.mxu0
    %2264 = vmatprep.subr.bf16.mxu0 %v2032
    %2265 = vmatpush1.bf16.msra.mxu0 %v2031
    %2266 = vmatprep.subr.bf16.mxu0 %v2036
    %2267 = vmatpush1.bf16.msra.mxu0 %v2035
    %2268 = vmatprep.subr.bf16.mxu0 %v2040
    %2269 = vmatpush1.bf16.msra.mxu0 %v2039
    %2270 = vmatprep.subr.bf16.mxu0 %v2044
    %2271 = vmatpush1.bf16.msra.mxu0 %v2043
    %2272 = vmatprep.subr.bf16.mxu0 %v2048
    %2273 = vmatpush1.bf16.msra.mxu0 %v2047
    %2274 = vmatprep.subr.bf16.mxu0 %v2052
    %2275 = vmatpush1.bf16.msra.mxu0 %v2051
    %2276 = vmatprep.subr.bf16.mxu0 %v2056
    %2277 = vmatpush1.bf16.msra.mxu0 %v2055
    %2278 = vmatprep.subr.bf16.mxu0 %v2060
    %2279 = vmatpush1.bf16.msra.mxu0 %v2059
    %2280 = vmatprep.subr.bf16.mxu0 %v2064
    %2281 = vmatpush1.bf16.msra.mxu0 %v2063
    %2282 = vmatprep.subr.bf16.mxu0 %v2068
    %2283 = vmatpush1.bf16.msra.mxu0 %v2067
    %2284 = vmatprep.subr.bf16.mxu0 %v2072
    %2285 = vmatpush1.bf16.msra.mxu0 %v2071
    %2286 = vmatprep.subr.bf16.mxu0 %v2076
    %2287 = vmatpush1.bf16.msra.mxu0 %v2075
    %2288 = vmatprep.subr.bf16.mxu0 %v2080
    %2289 = vmatpush1.bf16.msra.mxu0 %v2079
    %2290 = vmatprep.subr.bf16.mxu0 %v2084
    %2291 = vmatpush1.bf16.msra.mxu0 %v2083
    %2292 = vmatprep.subr.bf16.mxu0 %v2088
    %2293 = vmatpush1.bf16.msra.mxu0 %v2087
    %2294 = vmatprep.subr.bf16.mxu0 %v2092
    %2295 = vmatpush1.bf16.msra.mxu0 %v2091
    %2296 = vmatprep.mubr.bf16.mxu0 %v1432
    %2297 = vmatmul.mubr.bf16.gmra.mrb[0].mxu0 %v1431
    %v2298 = vpop.f32.mrb[0].mxu0
    %v2299 = vadd.f32 %v2258, %v2298
    %v2300 = vpop.f32.mrb[0].mxu0
    %v2301 = vadd.f32 %v2260, %v2300
    %v2302 = vpop.f32.mrb[0].mxu0
    %v2303 = vpop.f32.mrb[0].mxu0
    %2304 = vdwg.mxu0
    %2305 = vmatprep.subr.bf16.mxu0 %v1970
    %2306 = vmatpush1.bf16.msra.mxu0 %v1969
    %2307 = vmatprep.subr.bf16.mxu0 %v1974
    %2308 = vmatpush1.bf16.msra.mxu0 %v1973
    %2309 = vmatprep.subr.bf16.mxu0 %v1978
    %2310 = vmatpush1.bf16.msra.mxu0 %v1977
    %2311 = vmatprep.subr.bf16.mxu0 %v1982
    %2312 = vmatpush1.bf16.msra.mxu0 %v1981
    %2313 = vmatprep.subr.bf16.mxu0 %v1986
    %2314 = vmatpush1.bf16.msra.mxu0 %v1985
    %2315 = vmatprep.subr.bf16.mxu0 %v1990
    %2316 = vmatpush1.bf16.msra.mxu0 %v1989
    %2317 = vmatprep.subr.bf16.mxu0 %v1994
    %2318 = vmatpush1.bf16.msra.mxu0 %v1993
    %2319 = vmatprep.subr.bf16.mxu0 %v1998
    %2320 = vmatpush1.bf16.msra.mxu0 %v1997
    %2321 = vmatprep.subr.bf16.mxu0 %v2002
    %2322 = vmatpush1.bf16.msra.mxu0 %v2001
    %2323 = vmatprep.subr.bf16.mxu0 %v2006
    %2324 = vmatpush1.bf16.msra.mxu0 %v2005
    %2325 = vmatprep.subr.bf16.mxu0 %v2010
    %2326 = vmatpush1.bf16.msra.mxu0 %v2009
    %2327 = vmatprep.subr.bf16.mxu0 %v2014
    %2328 = vmatpush1.bf16.msra.mxu0 %v2013
    %2329 = vmatprep.subr.bf16.mxu0 %v2018
    %2330 = vmatpush1.bf16.msra.mxu0 %v2017
    %2331 = vmatprep.subr.bf16.mxu0 %v2022
    %2332 = vmatpush1.bf16.msra.mxu0 %v2021
    %2333 = vmatprep.subr.bf16.mxu0 %v2026
    %2334 = vmatpush1.bf16.msra.mxu0 %v2025
    %2335 = vmatprep.subr.bf16.mxu0 %v2030
    %2336 = vmatpush1.bf16.msra.mxu0 %v2029
    %2337 = vmatprep.mubr.bf16.mxu0 %v1430
    %2338 = vmatmul.mubr.bf16.gmra.mrb[0].mxu0 %v1429
    %v2339 = vpop.f32.mrb[0].mxu0
    %v2340 = vadd.f32 %v1574, %v2339
    %v2341 = vpop.f32.mrb[0].mxu0
    %v2342 = vadd.f32 %v1578, %v2341
    %v2343 = vpop.f32.mrb[0].mxu0
    %v2344 = vpop.f32.mrb[0].mxu0
    %2345 = vdwg.mxu0
    %2346 = vmatprep.subr.bf16.mxu0 %v2034
    %2347 = vmatpush1.bf16.msra.mxu0 %v2033
    %2348 = vmatprep.subr.bf16.mxu0 %v2038
    %2349 = vmatpush1.bf16.msra.mxu0 %v2037
    %2350 = vmatprep.subr.bf16.mxu0 %v2042
    %2351 = vmatpush1.bf16.msra.mxu0 %v2041
    %2352 = vmatprep.subr.bf16.mxu0 %v2046
    %2353 = vmatpush1.bf16.msra.mxu0 %v2045
    %2354 = vmatprep.subr.bf16.mxu0 %v2050
    %2355 = vmatpush1.bf16.msra.mxu0 %v2049
    %2356 = vmatprep.subr.bf16.mxu0 %v2054
    %2357 = vmatpush1.bf16.msra.mxu0 %v2053
    %2358 = vmatprep.subr.bf16.mxu0 %v2058
    %2359 = vmatpush1.bf16.msra.mxu0 %v2057
    %2360 = vmatprep.subr.bf16.mxu0 %v2062
    %2361 = vmatpush1.bf16.msra.mxu0 %v2061
    %2362 = vmatprep.subr.bf16.mxu0 %v2066
    %2363 = vmatpush1.bf16.msra.mxu0 %v2065
    %2364 = vmatprep.subr.bf16.mxu0 %v2070
    %2365 = vmatpush1.bf16.msra.mxu0 %v2069
    %2366 = vmatprep.subr.bf16.mxu0 %v2074
    %2367 = vmatpush1.bf16.msra.mxu0 %v2073
    %2368 = vmatprep.subr.bf16.mxu0 %v2078
    %2369 = vmatpush1.bf16.msra.mxu0 %v2077
    %2370 = vmatprep.subr.bf16.mxu0 %v2082
    %2371 = vmatpush1.bf16.msra.mxu0 %v2081
    %2372 = vmatprep.subr.bf16.mxu0 %v2086
    %2373 = vmatpush1.bf16.msra.mxu0 %v2085
    %2374 = vmatprep.subr.bf16.mxu0 %v2090
    %2375 = vmatpush1.bf16.msra.mxu0 %v2089
    %2376 = vmatprep.subr.bf16.mxu0 %v2094
    %2377 = vmatpush1.bf16.msra.mxu0 %v2093
    %2378 = vmatprep.mubr.bf16.mxu0 %v1432
    %2379 = vmatmul.mubr.bf16.gmra.mrb[0].mxu0 %v1431
    %v2380 = vpop.f32.mrb[0].mxu0
    %v2381 = vadd.f32 %v2340, %v2380
    %v2382 = vpop.f32.mrb[0].mxu0
    %v2383 = vadd.f32 %v2342, %v2382
    %v2384 = vpop.f32.mrb[0].mxu0
    %v2385 = vpop.f32.mrb[0].mxu0
    %2386 = vdwg.mxu0
    %v2387 = vxor.u32 %v2299, 2147483648
    %v2388 = vxor.u32 %v2301, 2147483648
    %v2389 = vxor.u32 %v2381, 2147483648
    %v2390 = vxor.u32 %v2383, 2147483648
    %v2391 = vmul.f32 %v2387, 1.442695
    %v2392 = vpow.pop %v2391
    %v2393 = vmul.f32 %v2388, 1.442695
    %v2394 = vpow.pop %v2393
    %v2395 = vmul.f32 %v2389, 1.442695
    %v2396 = vpow.pop %v2395
    %v2397 = vmul.f32 %v2390, 1.442695
    %v2398 = vpow.pop %v2397
    %v2399 = vadd.f32 %v2392, 1.0
    %v2400 = vadd.f32 %v2394, 1.0
    %v2401 = vadd.f32 %v2396, 1.0
    %v2402 = vadd.f32 %v2398, 1.0
    %v2403 = vrcp.pop %v2399
    %v2404 = vmul.f32 1.0, %v2403
    %v2405 = vrcp.pop %v2400
    %v2406 = vmul.f32 1.0, %v2405
    %v2407 = vrcp.pop %v2401
    %v2408 = vmul.f32 1.0, %v2407
    %v2409 = vrcp.pop %v2402
    %v2410 = vmul.f32 1.0, %v2409
    %v2411 = vpack.c.bf16 %v2404, %v2404
    %v2412 = vpack.c.bf16 %v2406, %v2406
    %v2413 = vpack.c.bf16 %v2408, %v2408
    %v2414 = vpack.c.bf16 %v2410, %v2410
    %v2415 = vld [vmem:[#allocation12] sm:$0xf]
    %v2416 = vld [vmem:[#allocation12 + $0x4] sm:$0xf]
    %v2417 = vld [vmem:[#allocation12 + $0x8] sm:$0xf]
    %v2418 = vld [vmem:[#allocation12 + $0xc] sm:$0xf]
    %v2419 = vld [vmem:[#allocation12 + $0x10] sm:$0xf]
    %v2420 = vld [vmem:[#allocation12 + $0x14] sm:$0xf]
    %v2421 = vld [vmem:[#allocation12 + $0x18] sm:$0xf]
    %v2422 = vld [vmem:[#allocation12 + $0x1c] sm:$0xf]
    %v2423 = vld [vmem:[#allocation12 + $0x20] sm:$0xf]
    %v2424 = vld [vmem:[#allocation12 + $0x24] sm:$0xf]
    %v2425 = vld [vmem:[#allocation12 + $0x28] sm:$0xf]
    %v2426 = vld [vmem:[#allocation12 + $0x2c] sm:$0xf]
    %v2427 = vld [vmem:[#allocation12 + $0x30] sm:$0xf]
    %v2428 = vld [vmem:[#allocation12 + $0x34] sm:$0xf]
    %v2429 = vld [vmem:[#allocation12 + $0x38] sm:$0xf]
    %v2430 = vld [vmem:[#allocation12 + $0x3c] sm:$0xf]
    %v2431 = vld [vmem:[#allocation12 + $0x40] sm:$0xf]
    %v2432 = vld [vmem:[#allocation12 + $0x44] sm:$0xf]
    %v2433 = vld [vmem:[#allocation12 + $0x48] sm:$0xf]
    %v2434 = vld [vmem:[#allocation12 + $0x4c] sm:$0xf]
    %v2435 = vld [vmem:[#allocation12 + $0x50] sm:$0xf]
    %v2436 = vld [vmem:[#allocation12 + $0x54] sm:$0xf]
    %v2437 = vld [vmem:[#allocation12 + $0x58] sm:$0xf]
    %v2438 = vld [vmem:[#allocation12 + $0x5c] sm:$0xf]
    %v2439 = vld [vmem:[#allocation12 + $0x60] sm:$0xf]
    %v2440 = vld [vmem:[#allocation12 + $0x64] sm:$0xf]
    %v2441 = vld [vmem:[#allocation12 + $0x68] sm:$0xf]
    %v2442 = vld [vmem:[#allocation12 + $0x6c] sm:$0xf]
    %v2443 = vld [vmem:[#allocation12 + $0x70] sm:$0xf]
    %v2444 = vld [vmem:[#allocation12 + $0x74] sm:$0xf]
    %v2445 = vld [vmem:[#allocation12 + $0x78] sm:$0xf]
    %v2446 = vld [vmem:[#allocation12 + $0x7c] sm:$0xf]
    %v2447 = vld [vmem:[#allocation12 + $0x80] sm:$0xf]
    %v2448 = vld [vmem:[#allocation12 + $0x84] sm:$0xf]
    %v2449 = vld [vmem:[#allocation12 + $0x88] sm:$0xf]
    %v2450 = vld [vmem:[#allocation12 + $0x8c] sm:$0xf]
    %v2451 = vld [vmem:[#allocation12 + $0x90] sm:$0xf]
    %v2452 = vld [vmem:[#allocation12 + $0x94] sm:$0xf]
    %v2453 = vld [vmem:[#allocation12 + $0x98] sm:$0xf]
    %v2454 = vld [vmem:[#allocation12 + $0x9c] sm:$0xf]
    %v2455 = vld [vmem:[#allocation12 + $0xa0] sm:$0xf]
    %v2456 = vld [vmem:[#allocation12 + $0xa4] sm:$0xf]
    %v2457 = vld [vmem:[#allocation12 + $0xa8] sm:$0xf]
    %v2458 = vld [vmem:[#allocation12 + $0xac] sm:$0xf]
    %v2459 = vld [vmem:[#allocation12 + $0xb0] sm:$0xf]
    %v2460 = vld [vmem:[#allocation12 + $0xb4] sm:$0xf]
    %v2461 = vld [vmem:[#allocation12 + $0xb8] sm:$0xf]
    %v2462 = vld [vmem:[#allocation12 + $0xbc] sm:$0xf]
    %v2463 = vld [vmem:[#allocation12 + $0xc0] sm:$0xf]
    %v2464 = vld [vmem:[#allocation12 + $0xc4] sm:$0xf]
    %v2465 = vld [vmem:[#allocation12 + $0xc8] sm:$0xf]
    %v2466 = vld [vmem:[#allocation12 + $0xcc] sm:$0xf]
    %v2467 = vld [vmem:[#allocation12 + $0xd0] sm:$0xf]
    %v2468 = vld [vmem:[#allocation12 + $0xd4] sm:$0xf]
    %v2469 = vld [vmem:[#allocation12 + $0xd8] sm:$0xf]
    %v2470 = vld [vmem:[#allocation12 + $0xdc] sm:$0xf]
    %v2471 = vld [vmem:[#allocation12 + $0xe0] sm:$0xf]
    %v2472 = vld [vmem:[#allocation12 + $0xe4] sm:$0xf]
    %v2473 = vld [vmem:[#allocation12 + $0xe8] sm:$0xf]
    %v2474 = vld [vmem:[#allocation12 + $0xec] sm:$0xf]
    %v2475 = vld [vmem:[#allocation12 + $0xf0] sm:$0xf]
    %v2476 = vld [vmem:[#allocation12 + $0xf4] sm:$0xf]
    %v2477 = vld [vmem:[#allocation12 + $0xf8] sm:$0xf]
    %v2478 = vld [vmem:[#allocation12 + $0xfc] sm:$0xf]
    %v2479 = vld [vmem:[%s11] sm:$0x1]
    %v2481 = vlaneseq
    %v2482 = vshrl.u32 %v2481, 7
    %v2483 = vsub.s32 0, %v2482
    %v2484 = vrot.slane %v2479, %v2483
    %v2550 = vunpack.c.l.b16 %v2415
    %v2551 = vunpack.c.l.b16 %v2416
    %v2552 = vunpack.c.l.b16 %v2417
    %v2553 = vunpack.c.l.b16 %v2418
    %v2554 = vunpack.c.l.b16 %v2419
    %v2555 = vunpack.c.l.b16 %v2420
    %v2556 = vunpack.c.l.b16 %v2421
    %v2557 = vunpack.c.l.b16 %v2422
    %v2558 = vunpack.c.l.b16 %v2423
    %v2559 = vunpack.c.l.b16 %v2424
    %v2560 = vunpack.c.l.b16 %v2425
    %v2561 = vunpack.c.l.b16 %v2426
    %v2562 = vunpack.c.l.b16 %v2427
    %v2563 = vunpack.c.l.b16 %v2428
    %v2564 = vunpack.c.l.b16 %v2429
    %v2565 = vunpack.c.l.b16 %v2430
    %v2566 = vunpack.c.l.b16 %v2431
    %v2567 = vunpack.c.l.b16 %v2432
    %v2568 = vunpack.c.l.b16 %v2433
    %v2569 = vunpack.c.l.b16 %v2434
    %v2570 = vunpack.c.l.b16 %v2435
    %v2571 = vunpack.c.l.b16 %v2436
    %v2572 = vunpack.c.l.b16 %v2437
    %v2573 = vunpack.c.l.b16 %v2438
    %v2574 = vunpack.c.l.b16 %v2439
    %v2575 = vunpack.c.l.b16 %v2440
    %v2576 = vunpack.c.l.b16 %v2441
    %v2577 = vunpack.c.l.b16 %v2442
    %v2578 = vunpack.c.l.b16 %v2443
    %v2579 = vunpack.c.l.b16 %v2444
    %v2580 = vunpack.c.l.b16 %v2445
    %v2581 = vunpack.c.l.b16 %v2446
    %v2582 = vunpack.c.l.b16 %v2447
    %v2583 = vunpack.c.l.b16 %v2448
    %v2584 = vunpack.c.l.b16 %v2449
    %v2585 = vunpack.c.l.b16 %v2450
    %v2586 = vunpack.c.l.b16 %v2451
    %v2587 = vunpack.c.l.b16 %v2452
    %v2588 = vunpack.c.l.b16 %v2453
    %v2589 = vunpack.c.l.b16 %v2454
    %v2590 = vunpack.c.l.b16 %v2455
    %v2591 = vunpack.c.l.b16 %v2456
    %v2592 = vunpack.c.l.b16 %v2457
    %v2593 = vunpack.c.l.b16 %v2458
    %v2594 = vunpack.c.l.b16 %v2459
    %v2595 = vunpack.c.l.b16 %v2460
    %v2596 = vunpack.c.l.b16 %v2461
    %v2597 = vunpack.c.l.b16 %v2462
    %v2598 = vunpack.c.l.b16 %v2463
    %v2599 = vunpack.c.l.b16 %v2464
    %v2600 = vunpack.c.l.b16 %v2465
    %v2601 = vunpack.c.l.b16 %v2466
    %v2602 = vunpack.c.l.b16 %v2467
    %v2603 = vunpack.c.l.b16 %v2468
    %v2604 = vunpack.c.l.b16 %v2469
    %v2605 = vunpack.c.l.b16 %v2470
    %v2606 = vunpack.c.l.b16 %v2471
    %v2607 = vunpack.c.l.b16 %v2472
    %v2608 = vunpack.c.l.b16 %v2473
    %v2609 = vunpack.c.l.b16 %v2474
    %v2610 = vunpack.c.l.b16 %v2475
    %v2611 = vunpack.c.l.b16 %v2476
    %v2612 = vunpack.c.l.b16 %v2477
    %v2613 = vunpack.c.l.b16 %v2478
    %v2614 = vpack.c.b16 %v2551, %v2550
    %v2615 = vpack.c.b16 %v2553, %v2552
    %v2616 = vpack.c.b16 %v2555, %v2554
    %v2617 = vpack.c.b16 %v2557, %v2556
    %v2618 = vpack.c.b16 %v2559, %v2558
    %v2619 = vpack.c.b16 %v2561, %v2560
    %v2620 = vpack.c.b16 %v2563, %v2562
    %v2621 = vpack.c.b16 %v2565, %v2564
    %v2622 = vpack.c.b16 %v2567, %v2566
    %v2623 = vpack.c.b16 %v2569, %v2568
    %v2624 = vpack.c.b16 %v2571, %v2570
    %v2625 = vpack.c.b16 %v2573, %v2572
    %v2626 = vpack.c.b16 %v2575, %v2574
    %v2627 = vpack.c.b16 %v2577, %v2576
    %v2628 = vpack.c.b16 %v2579, %v2578
    %v2629 = vpack.c.b16 %v2581, %v2580
    %v2630 = vpack.c.b16 %v2583, %v2582
    %v2631 = vpack.c.b16 %v2585, %v2584
    %v2632 = vpack.c.b16 %v2587, %v2586
    %v2633 = vpack.c.b16 %v2589, %v2588
    %v2634 = vpack.c.b16 %v2591, %v2590
    %v2635 = vpack.c.b16 %v2593, %v2592
    %v2636 = vpack.c.b16 %v2595, %v2594
    %v2637 = vpack.c.b16 %v2597, %v2596
    %v2638 = vpack.c.b16 %v2599, %v2598
    %v2639 = vpack.c.b16 %v2601, %v2600
    %v2640 = vpack.c.b16 %v2603, %v2602
    %v2641 = vpack.c.b16 %v2605, %v2604
    %v2642 = vpack.c.b16 %v2607, %v2606
    %v2643 = vpack.c.b16 %v2609, %v2608
    %v2644 = vpack.c.b16 %v2611, %v2610
    %v2645 = vpack.c.b16 %v2613, %v2612
    %2678 = vmatprep.subr.bf16.mxu0 0
    %2679 = vmatpush1.bf16.msra.mxu0 %v2614
    %2680 = vmatprep.subr.bf16.mxu0 0
    %2681 = vmatpush1.bf16.msra.mxu0 %v2615
    %2682 = vmatprep.subr.bf16.mxu0 0
    %2683 = vmatpush1.bf16.msra.mxu0 %v2616
    %2684 = vmatprep.subr.bf16.mxu0 0
    %2685 = vmatpush1.bf16.msra.mxu0 %v2617
    %2686 = vmatprep.subr.bf16.mxu0 0
    %2687 = vmatpush1.bf16.msra.mxu0 %v2618
    %2688 = vmatprep.subr.bf16.mxu0 0
    %2689 = vmatpush1.bf16.msra.mxu0 %v2619
    %2690 = vmatprep.subr.bf16.mxu0 0
    %2691 = vmatpush1.bf16.msra.mxu0 %v2620
    %2692 = vmatprep.subr.bf16.mxu0 0
    %2693 = vmatpush1.bf16.msra.mxu0 %v2621
    %2694 = vmatprep.subr.bf16.mxu0 0
    %2695 = vmatpush1.bf16.msra.mxu0 %v2622
    %2696 = vmatprep.subr.bf16.mxu0 0
    %2697 = vmatpush1.bf16.msra.mxu0 %v2623
    %2698 = vmatprep.subr.bf16.mxu0 0
    %2699 = vmatpush1.bf16.msra.mxu0 %v2624
    %2700 = vmatprep.subr.bf16.mxu0 0
    %2701 = vmatpush1.bf16.msra.mxu0 %v2625
    %2702 = vmatprep.subr.bf16.mxu0 0
    %2703 = vmatpush1.bf16.msra.mxu0 %v2626
    %2704 = vmatprep.subr.bf16.mxu0 0
    %2705 = vmatpush1.bf16.msra.mxu0 %v2627
    %2706 = vmatprep.subr.bf16.mxu0 0
    %2707 = vmatpush1.bf16.msra.mxu0 %v2628
    %2708 = vmatprep.subr.bf16.mxu0 0
    %2709 = vmatpush1.bf16.msra.mxu0 %v2629
    %2710 = vmatprep.mubr.bf16.mxu0 %v2412
    %2711 = vmatmul.mubr.bf16.gmra.mrb[0].mxu0 %v2411
    %v2712 = vpop.f32.mrb[0].mxu0
    %v2713 = vadd.f32 %v2484, %v2712
    %v2714 = vpop.f32.mrb[0].mxu0
    %v2715 = vpop.f32.mrb[0].mxu0
    %v2716 = vpop.f32.mrb[0].mxu0
    %2717 = vdwg.mxu0
    %2718 = vmatprep.subr.bf16.mxu0 0
    %2719 = vmatpush1.bf16.msra.mxu0 %v2630
    %2720 = vmatprep.subr.bf16.mxu0 0
    %2721 = vmatpush1.bf16.msra.mxu0 %v2631
    %2722 = vmatprep.subr.bf16.mxu0 0
    %2723 = vmatpush1.bf16.msra.mxu0 %v2632
    %2724 = vmatprep.subr.bf16.mxu0 0
    %2725 = vmatpush1.bf16.msra.mxu0 %v2633
    %2726 = vmatprep.subr.bf16.mxu0 0
    %2727 = vmatpush1.bf16.msra.mxu0 %v2634
    %2728 = vmatprep.subr.bf16.mxu0 0
    %2729 = vmatpush1.bf16.msra.mxu0 %v2635
    %2730 = vmatprep.subr.bf16.mxu0 0
    %2731 = vmatpush1.bf16.msra.mxu0 %v2636
    %2732 = vmatprep.subr.bf16.mxu0 0
    %2733 = vmatpush1.bf16.msra.mxu0 %v2637
    %2734 = vmatprep.subr.bf16.mxu0 0
    %2735 = vmatpush1.bf16.msra.mxu0 %v2638
    %2736 = vmatprep.subr.bf16.mxu0 0
    %2737 = vmatpush1.bf16.msra.mxu0 %v2639
    %2738 = vmatprep.subr.bf16.mxu0 0
    %2739 = vmatpush1.bf16.msra.mxu0 %v2640
    %2740 = vmatprep.subr.bf16.mxu0 0
    %2741 = vmatpush1.bf16.msra.mxu0 %v2641
    %2742 = vmatprep.subr.bf16.mxu0 0
    %2743 = vmatpush1.bf16.msra.mxu0 %v2642
    %2744 = vmatprep.subr.bf16.mxu0 0
    %2745 = vmatpush1.bf16.msra.mxu0 %v2643
    %2746 = vmatprep.subr.bf16.mxu0 0
    %2747 = vmatpush1.bf16.msra.mxu0 %v2644
    %2748 = vmatprep.subr.bf16.mxu0 0
    %2749 = vmatpush1.bf16.msra.mxu0 %v2645
    %2750 = vmatprep.mubr.bf16.mxu0 %v2414
    %2751 = vmatmul.mubr.bf16.gmra.mrb[0].mxu0 %v2413
    %v2752 = vpop.f32.mrb[0].mxu0
    %v2753 = vadd.f32 %v2713, %v2752
    %v2754 = vpop.f32.mrb[0].mxu0
    %v2755 = vpop.f32.mrb[0].mxu0
    %v2756 = vpop.f32.mrb[0].mxu0
    %2757 = vdwg.mxu0
    %s2758 = sld [smem:[#allocation2]]
    %vm2759 = vcmp.ge.f32.partialorder %v2753, 0.0
    %v2760 = vstv %s2758
    %v2761 = vmul.f32 %v2760, %v2753
    %v2762 = vsel %vm2759, %v2753, %v2761
    %2763 = vst [vmem:[#allocation14] sm:$0x3] %v2762
    // Predicated region
    $region74: #{tpu_custom_call.1} parent=1 // pred_check
      _
    $region75: #{tpu_custom_call.1} parent=1 // pred_check_branch
      %2765 = sbr.rel (0) target = $region77
    $region76: #{tpu_custom_call.1} parent=1 // pred_region
      %s2767 = ssub.s32 32, 32
      %2768 = vsyncadd [#allocation5], %s2767
      %s2770 = sshll.u32 [#allocation14], 4
      %s2771 = int_to_ptr.vmem [resolvable:$true] %s2770
      %2773 = dma.vmem_to_hbm [thread:$0]  %s2771, 32, %s12, [#allocation5]
    $region77: #{tpu_custom_call.1} parent=1 // pred_fallthru
      _
    // Predicated region
    $region78: #{tpu_custom_call.1} parent=1 // pred_check
      _
    $region79: #{tpu_custom_call.1} parent=1 // pred_check_branch
      %2775 = sbr.rel (0) target = $region81
    $region80: #{tpu_custom_call.1} parent=1 // pred_region
      %2776 = dma.done [#allocation5], 32
    $region81: #{tpu_custom_call.1} parent=1 // pred_fallthru
      _
    %2777 = vsyncpa [#allocation4], 1
    %2778 = vsyncpa [#allocation7], 1
    %2779 = vsyncpa [#allocation10], 1
    %2780 = vsyncpa [#allocation13], 1
    %2781 = vsyncpa [#allocation5], 1

</llo_original>
